<compile_context>
chip_gen: v7x
topology: tpu7x:2x2x1
jax: 0.10.0
libtpu: 0.0.40
codegen_flags: <defaults>
</compile_context>

<pallas_src>
import math

import jax
import jax.numpy as jnp
from jax.experimental import pallas as pl
from jax.experimental.pallas import tpu as pltpu


def sdpa_pallas(q, k2, v2, mask, *, compute_dtype=jnp.bfloat16):
    """q, k2, v2: [B, S, D]; mask: [1, S, S] (additive, broadcast over batch).

    Returns [B, S, D] in q.dtype. Matmuls run with bf16 MXU inputs and f32
    accumulation (standard flash-attention numerics).
    """
    B, S, D = q.shape
    assert k2.shape == (B, S, D) and v2.shape == (B, S, D)
    assert mask.shape == (1, S, S)

    LANE = 128
    # Lane-dense head dim.
    Dp = max(LANE, -(-D // LANE) * LANE)
    # Sequence padding / tile sizes: one lane-dense tile for small S,
    # 256-wide tiles (fills the 256x256 MXU on v6e/v7x) for large S.
    S128 = -(-S // LANE) * LANE
    if S128 <= 256:
        S_pad = S128
        TQ = TK = S_pad
    else:
        TQ = TK = 256
        S_pad = -(-S // TQ) * TQ

    n_q = S_pad // TQ
    n_k = S_pad // TK

    # Batch block: amortize the (batch-independent) mask DMA across Bb batches,
    # but keep (B//Bb) * n_q >= 2 so both v7x TensorCores get work.
    Bb = 1
    for cand in range(min(B, 8), 0, -1):
        if B % cand == 0 and (B // cand) * n_q >= 2:
            Bb = cand
            break

    pad_s, pad_d = S_pad - S, Dp - D
    NEG = -1e30  # finite additive mask value for padded KV positions

    scale = 1.0 / math.sqrt(D)  # original head dim, not the padded one

    # Pre-scale + pre-cast in the wrapper (bf16 streamed operands).
    qp = jnp.pad((q * scale).astype(compute_dtype), ((0, 0), (0, pad_s), (0, pad_d)))
    kp = jnp.pad(k2.astype(compute_dtype), ((0, 0), (0, pad_s), (0, pad_d)))
    vp = jnp.pad(v2.astype(compute_dtype), ((0, 0), (0, pad_s), (0, pad_d)))
    # Mask add stays in f32 for accuracy; padded rows/cols get a large-negative
    # (finite) value so padded KV positions vanish in the softmax.
    maskp = jnp.pad(mask.astype(jnp.float32),
                    ((0, 0), (0, pad_s), (0, pad_s)),
                    constant_values=NEG)

    def kernel(q_ref, k_ref, v_ref, m_ref, o_ref, m_sc, l_sc, acc_sc):
        ki = pl.program_id(2)

        @pl.when(ki == 0)
        def _():
            m_sc[...] = jnp.full_like(m_sc, -jnp.inf)
            l_sc[...] = jnp.zeros_like(l_sc)
            acc_sc[...] = jnp.zeros_like(acc_sc)

        # q_ref/k_ref/v_ref: (Bb, T, Dp) bf16 (q already scaled); contraction
        # over the last dims -- no explicit k.T / XLU transpose.
        s = jnp.einsum("bqd,bkd->bqk", q_ref[...], k_ref[...],
                       preferred_element_type=jnp.float32)   # (Bb, TQ, TK) f32
        s = s + m_ref[...]                                    # (TQ, TK) f32, bcast over Bb

        m_prev = m_sc[...]                                    # (Bb, TQ, 1)
        m_new = jnp.maximum(m_prev, jnp.max(s, axis=-1, keepdims=True))
        alpha = jnp.exp(m_prev - m_new)
        p = jnp.exp(s - m_new)

        l_sc[...] = alpha * l_sc[...] + jnp.sum(p, axis=-1, keepdims=True)
        acc_sc[...] = alpha * acc_sc[...] + jnp.einsum(
            "bqk,bkd->bqd", p.astype(compute_dtype), v_ref[...],
            preferred_element_type=jnp.float32)
        m_sc[...] = m_new

        @pl.when(ki == pl.num_programs(2) - 1)
        def _():
            inv_l = pl.reciprocal(l_sc[...], approx=True)     # EUP vrcp
            o_ref[...] = (acc_sc[...] * inv_l).astype(o_ref.dtype)

    out_p = pl.pallas_call(
        kernel,
        out_shape=jax.ShapeDtypeStruct((B, S_pad, Dp), q.dtype),
        grid_spec=pltpu.PrefetchScalarGridSpec(
            num_scalar_prefetch=0,
            grid=(B // Bb, n_q, n_k),
            in_specs=[
                pl.BlockSpec((Bb, TQ, Dp), lambda b, qi, ki: (b, qi, 0)),     # q
                pl.BlockSpec((Bb, TK, Dp), lambda b, qi, ki: (b, ki, 0)),     # k
                pl.BlockSpec((Bb, TK, Dp), lambda b, qi, ki: (b, ki, 0)),     # v
                pl.BlockSpec((None, TQ, TK), lambda b, qi, ki: (0, qi, ki)),  # mask
            ],
            out_specs=pl.BlockSpec((Bb, TQ, Dp), lambda b, qi, ki: (b, qi, 0)),
            scratch_shapes=[
                pltpu.VMEM((Bb, TQ, 1), jnp.float32),   # running max  m
                pltpu.VMEM((Bb, TQ, 1), jnp.float32),   # running sum  l
                pltpu.VMEM((Bb, TQ, Dp), jnp.float32),  # output accumulator
            ],
        ),
        compiler_params=pltpu.CompilerParams(
            dimension_semantics=("parallel", "parallel", "arbitrary"),
            vmem_limit_bytes=32 * 1024 * 1024,
        ),
    )(qp, kp, vp, maskp)

    return out_p[:, :S, :D]


def sdpa_ref(q, k2, v2, mask):
    qk = jnp.einsum("bqd,bkd->bqk", q, k2) / math.sqrt(q.shape[-1])
    qk = qk + mask
    w = jax.nn.softmax(qk, axis=-1)
    return jnp.einsum("bqk,bkd->bqd", w, v2)


if __name__ == "__main__":
    # Shapes consistent with the module: mask is (1, 56, 56) => seq = 56.
    B, S, D = 2, 56, 32
    key = jax.random.PRNGKey(0)
    kq, kk, kv_, km = jax.random.split(key, 4)

    q = jax.random.normal(kq, (B, S, D), dtype=jnp.float32)
    k2 = jax.random.normal(kk, (B, S, D), dtype=jnp.float32)
    v2 = jax.random.normal(kv_, (B, S, D), dtype=jnp.float32)
    # Additive mask mirroring `(rand(1,S,S) > 0.7)` positions set to -1e9.
    mask = jnp.where(jax.random.uniform(km, (1, S, S)) > 0.7,
                     jnp.float32(-1e9), jnp.float32(0.0))

    out = sdpa_pallas(q, k2, v2, mask)
    jax.block_until_ready(out)

    ref = sdpa_ref(q, k2, v2, mask)
    max_err = float(jnp.max(jnp.abs(out - ref)))
    # bf16 MXU inputs with f32 accumulation -> loose-ish tolerance.
    assert jnp.allclose(out, ref, atol=2e-2, rtol=2e-2), (
        f"mismatch vs reference (max abs err {max_err})")
    print("KERNEL_OK")
</pallas_src>

<mosaic_0001>
module attributes {stable_mosaic.version = 11 : i64} {
  func.func @kernel(%arg0: i32, %arg1: i32, %arg2: i32, %arg3: memref<1x128x128xbf16, #tpu.memory_space<vmem>>, %arg4: memref<1x128x128xbf16, #tpu.memory_space<vmem>>, %arg5: memref<1x128x128xbf16, #tpu.memory_space<vmem>>, %arg6: memref<1x128x128xf32, #tpu.memory_space<vmem>>, %arg7: memref<1x128x128xf32, #tpu.memory_space<vmem>>, %arg8: memref<1x128x1xf32, #tpu.memory_space<vmem>>, %arg9: memref<1x128x1xf32, #tpu.memory_space<vmem>>, %arg10: memref<1x128x128xf32, #tpu.memory_space<vmem>>) attributes {dimension_semantics = [#tpu.dimension_semantics<parallel>, #tpu.dimension_semantics<parallel>, #tpu.dimension_semantics<arbitrary>], iteration_bounds = array<i64: 2, 1, 1>, scalar_prefetch = 0 : i64, scratch_operands = 3 : i64, tpu.core_type = #tpu.core_type<tc>, window_params = [{transform_indices = @transform_0, window_bounds = array<i64: 1, 128, 128>}, {transform_indices = @transform_1, window_bounds = array<i64: 1, 128, 128>}, {transform_indices = @transform_2, window_bounds = array<i64: 1, 128, 128>}, {transform_indices = @transform_3, window_bounds = array<i64: 1, 128, 128>}, {transform_indices = @transform_4, window_bounds = array<i64: 1, 128, 128>}]} {
    %c0_i32 = arith.constant 0 : i32
    %0 = arith.cmpi eq, %arg2, %c0_i32 : i32
    %1 = arith.extui %0 : i1 to i32
    %c0_i32_0 = arith.constant 0 : i32
    %2 = arith.cmpi ne, %1, %c0_i32_0 : i32
    scf.if %2 {
      %cst_35 = arith.constant 0xFF800000 : f32
      %37 = vector.broadcast %cst_35 : f32 to vector<1x128x1xf32>
      %c0_36 = arith.constant 0 : index
      %c0_37 = arith.constant 0 : index
      %c0_38 = arith.constant 0 : index
      %38 = vector.load %arg8[%c0_36, %c0_37, %c0_38] : memref<1x128x1xf32, #tpu.memory_space<vmem>>, vector<1x128x1xf32>
      tpu.vector_store %arg8[%c0_36, %c0_37, %c0_38], %37 {strides = array<i32>} : memref<1x128x1xf32, #tpu.memory_space<vmem>>, vector<1x128x1xf32>,
      %cst_39 = arith.constant 0.000000e+00 : f32
      %39 = vector.broadcast %cst_39 : f32 to vector<1x128x1xf32>
      %c0_40 = arith.constant 0 : index
      %c0_41 = arith.constant 0 : index
      %c0_42 = arith.constant 0 : index
      %40 = vector.load %arg9[%c0_40, %c0_41, %c0_42] : memref<1x128x1xf32, #tpu.memory_space<vmem>>, vector<1x128x1xf32>
      tpu.vector_store %arg9[%c0_40, %c0_41, %c0_42], %39 {strides = array<i32>} : memref<1x128x1xf32, #tpu.memory_space<vmem>>, vector<1x128x1xf32>,
      %cst_43 = arith.constant 0.000000e+00 : f32
      %41 = vector.broadcast %cst_43 : f32 to vector<1x128x128xf32>
      %c0_44 = arith.constant 0 : index
      %c0_45 = arith.constant 0 : index
      %c0_46 = arith.constant 0 : index
      %42 = vector.load %arg10[%c0_44, %c0_45, %c0_46] : memref<1x128x128xf32, #tpu.memory_space<vmem>>, vector<1x128x128xf32>
      tpu.vector_store %arg10[%c0_44, %c0_45, %c0_46], %41 {strides = array<i32>} : memref<1x128x128xf32, #tpu.memory_space<vmem>>, vector<1x128x128xf32>,
    } else {
    }
    %c0 = arith.constant 0 : index
    %c0_1 = arith.constant 0 : index
    %c0_2 = arith.constant 0 : index
    %3 = vector.load %arg3[%c0, %c0_1, %c0_2] : memref<1x128x128xbf16, #tpu.memory_space<vmem>>, vector<1x128x128xbf16>
    %c0_3 = arith.constant 0 : index
    %c0_4 = arith.constant 0 : index
    %c0_5 = arith.constant 0 : index
    %4 = vector.load %arg4[%c0_3, %c0_4, %c0_5] : memref<1x128x128xbf16, #tpu.memory_space<vmem>>, vector<1x128x128xbf16>
    "tpu.trace_start"() <{level = 10 : i32, message = "bqd,bkd->bqk"}> : () -> ()
    %cst = arith.constant dense<0.000000e+00> : vector<1x128x128xf32>
    %5 = tpu.matmul %3, %4, %cst {dimension_numbers = #tpu.dot_dimension_numbers<[2], [2], [1], [1], [0, 0, 0, 1, 1, 1], [0], [0]>} : vector<1x128x128xbf16>, vector<1x128x128xbf16>, vector<1x128x128xf32> -> vector<1x128x128xf32>
    "tpu.trace_stop"() : () -> ()
    %c0_6 = arith.constant 0 : index
    %c0_7 = arith.constant 0 : index
    %c0_8 = arith.constant 0 : index
    %6 = vector.load %arg6[%c0_6, %c0_7, %c0_8] : memref<1x128x128xf32, #tpu.memory_space<vmem>>, vector<1x128x128xf32>
    %7 = vector.shape_cast %6 : vector<1x128x128xf32> to vector<128x128xf32>
    %8 = vector.shape_cast %7 : vector<128x128xf32> to vector<1x128x128xf32>
    %9 = arith.addf %5, %8 : vector<1x128x128xf32>
    %c0_9 = arith.constant 0 : index
    %c0_10 = arith.constant 0 : index
    %c0_11 = arith.constant 0 : index
    %10 = vector.load %arg8[%c0_9, %c0_10, %c0_11] : memref<1x128x1xf32, #tpu.memory_space<vmem>>, vector<1x128x1xf32>
    %cst_12 = arith.constant dense<0xFF800000> : vector<1x128xf32>
    %11 = vector.multi_reduction <maximumf>, %9, %cst_12 [2] : vector<1x128x128xf32> to vector<1x128xf32>
    %12 = vector.shape_cast %11 : vector<1x128xf32> to vector<1x128x1xf32>
    %13 = arith.maximumf %10, %12 : vector<1x128x1xf32>
    %14 = arith.subf %10, %13 : vector<1x128x1xf32>
    %15 = math.exp %14 : vector<1x128x1xf32>
    %16 = vector.broadcast %13 : vector<1x128x1xf32> to vector<1x128x128xf32>
    %17 = arith.subf %9, %16 : vector<1x128x128xf32>
    %18 = math.exp %17 : vector<1x128x128xf32>
    %c0_13 = arith.constant 0 : index
    %c0_14 = arith.constant 0 : index
    %c0_15 = arith.constant 0 : index
    %19 = vector.load %arg9[%c0_13, %c0_14, %c0_15] : memref<1x128x1xf32, #tpu.memory_space<vmem>>, vector<1x128x1xf32>
    %20 = arith.mulf %15, %19 : vector<1x128x1xf32>
    %cst_16 = arith.constant dense<0.000000e+00> : vector<1x128xf32>
    %21 = vector.multi_reduction <add>, %18, %cst_16 [2] : vector<1x128x128xf32> to vector<1x128xf32>
    %22 = vector.shape_cast %21 : vector<1x128xf32> to vector<1x128x1xf32>
    %23 = arith.addf %20, %22 : vector<1x128x1xf32>
    %c0_17 = arith.constant 0 : index
    %c0_18 = arith.constant 0 : index
    %c0_19 = arith.constant 0 : index
    %24 = vector.load %arg9[%c0_17, %c0_18, %c0_19] : memref<1x128x1xf32, #tpu.memory_space<vmem>>, vector<1x128x1xf32>
    tpu.vector_store %arg9[%c0_17, %c0_18, %c0_19], %23 {strides = array<i32>} : memref<1x128x1xf32, #tpu.memory_space<vmem>>, vector<1x128x1xf32>,
    %c0_20 = arith.constant 0 : index
    %c0_21 = arith.constant 0 : index
    %c0_22 = arith.constant 0 : index
    %25 = vector.load %arg10[%c0_20, %c0_21, %c0_22] : memref<1x128x128xf32, #tpu.memory_space<vmem>>, vector<1x128x128xf32>
    %26 = vector.broadcast %15 : vector<1x128x1xf32> to vector<1x128x128xf32>
    %27 = arith.mulf %26, %25 : vector<1x128x128xf32>
    %28 = arith.truncf %18 : vector<1x128x128xf32> to vector<1x128x128xbf16>
    %c0_23 = arith.constant 0 : index
    %c0_24 = arith.constant 0 : index
    %c0_25 = arith.constant 0 : index
    %29 = vector.load %arg5[%c0_23, %c0_24, %c0_25] : memref<1x128x128xbf16, #tpu.memory_space<vmem>>, vector<1x128x128xbf16>
    "tpu.trace_start"() <{level = 10 : i32, message = "bqk,bkd->bqd"}> : () -> ()
    %cst_26 = arith.constant dense<0.000000e+00> : vector<1x128x128xf32>
    %30 = tpu.matmul %28, %29, %cst_26 {dimension_numbers = #tpu.dot_dimension_numbers<[2], [1], [1], [2], [0, 0, 0, 1, 1, 2], [0], [0]>} : vector<1x128x128xbf16>, vector<1x128x128xbf16>, vector<1x128x128xf32> -> vector<1x128x128xf32>
    "tpu.trace_stop"() : () -> ()
    %31 = arith.addf %27, %30 : vector<1x128x128xf32>
    %c0_27 = arith.constant 0 : index
    %c0_28 = arith.constant 0 : index
    %c0_29 = arith.constant 0 : index
    %32 = vector.load %arg10[%c0_27, %c0_28, %c0_29] : memref<1x128x128xf32, #tpu.memory_space<vmem>>, vector<1x128x128xf32>
    tpu.vector_store %arg10[%c0_27, %c0_28, %c0_29], %31 {strides = array<i32>} : memref<1x128x128xf32, #tpu.memory_space<vmem>>, vector<1x128x128xf32>,
    %c0_30 = arith.constant 0 : index
    %c0_31 = arith.constant 0 : index
    %c0_32 = arith.constant 0 : index
    %33 = vector.load %arg8[%c0_30, %c0_31, %c0_32] : memref<1x128x1xf32, #tpu.memory_space<vmem>>, vector<1x128x1xf32>
    tpu.vector_store %arg8[%c0_30, %c0_31, %c0_32], %13 {strides = array<i32>} : memref<1x128x1xf32, #tpu.memory_space<vmem>>, vector<1x128x1xf32>,
    %c0_i32_33 = arith.constant 0 : i32
    %34 = arith.cmpi eq, %arg2, %c0_i32_33 : i32
    %35 = arith.extui %34 : i1 to i32
    %c0_i32_34 = arith.constant 0 : i32
    %36 = arith.cmpi ne, %35, %c0_i32_34 : i32
    scf.if %36 {
      %c0_35 = arith.constant 0 : index
      %c0_36 = arith.constant 0 : index
      %c0_37 = arith.constant 0 : index
      %37 = vector.load %arg9[%c0_35, %c0_36, %c0_37] : memref<1x128x1xf32, #tpu.memory_space<vmem>>, vector<1x128x1xf32>
      %38 = tpu.reciprocal %37 {approx = true} : vector<1x128x1xf32> -> vector<1x128x1xf32>
      %c0_38 = arith.constant 0 : index
      %c0_39 = arith.constant 0 : index
      %c0_40 = arith.constant 0 : index
      %39 = vector.load %arg10[%c0_38, %c0_39, %c0_40] : memref<1x128x128xf32, #tpu.memory_space<vmem>>, vector<1x128x128xf32>
      %40 = vector.broadcast %38 : vector<1x128x1xf32> to vector<1x128x128xf32>
      %41 = arith.mulf %39, %40 : vector<1x128x128xf32>
      %c0_41 = arith.constant 0 : index
      %c0_42 = arith.constant 0 : index
      %c0_43 = arith.constant 0 : index
      %42 = vector.load %arg7[%c0_41, %c0_42, %c0_43] : memref<1x128x128xf32, #tpu.memory_space<vmem>>, vector<1x128x128xf32>
      tpu.vector_store %arg7[%c0_41, %c0_42, %c0_43], %41 {strides = array<i32>} : memref<1x128x128xf32, #tpu.memory_space<vmem>>, vector<1x128x128xf32>,
    } else {
    }
    return
  }
  func.func @transform_0(%arg0: i32, %arg1: i32, %arg2: i32) -> (i32, i32, i32) {
    %c0_i32 = arith.constant 0 : i32
    %c0_i32_0 = arith.constant 0 : i32
    return %arg0, %arg1, %c0_i32 : i32, i32, i32
  }
  func.func @transform_1(%arg0: i32, %arg1: i32, %arg2: i32) -> (i32, i32, i32) {
    %c0_i32 = arith.constant 0 : i32
    %c0_i32_0 = arith.constant 0 : i32
    return %arg0, %arg2, %c0_i32 : i32, i32, i32
  }
  func.func @transform_2(%arg0: i32, %arg1: i32, %arg2: i32) -> (i32, i32, i32) {
    %c0_i32 = arith.constant 0 : i32
    %c0_i32_0 = arith.constant 0 : i32
    return %arg0, %arg2, %c0_i32 : i32, i32, i32
  }
  func.func @transform_3(%arg0: i32, %arg1: i32, %arg2: i32) -> (i32, i32, i32) {
    %c0_i32 = arith.constant 0 : i32
    %c0_i32_0 = arith.constant 0 : i32
    return %c0_i32, %arg1, %arg2 : i32, i32, i32
  }
  func.func @transform_4(%arg0: i32, %arg1: i32, %arg2: i32) -> (i32, i32, i32) {
    %c0_i32 = arith.constant 0 : i32
    %c0_i32_0 = arith.constant 0 : i32
    return %arg0, %arg1, %c0_i32 : i32, i32, i32
  }
}

</mosaic_0001>

<llo_original>
// kernel: tpu_custom_call.1
$region0: #{tpu_custom_call.1}
  #allocation0 [shape = 'u32[]', space=smem, size = 0x4, offset = 0x4, fixed_abs, tag = 'smem constant byte address 0x4 - core index']
  #allocation1 [shape = 'u32[144,128]{1,0:T(1,128)}', space=vmem, size = 0x12000, scoped, tag = 'internal scratch']
  #allocation2 [shape = 'f32[1,128,1]{2,1,0:T(8,128)}', space=vmem, size = 0x10000, scoped, tag = 'scratch operand']
  #allocation3 [shape = 'f32[1,128,1]{2,1,0:T(8,128)}', space=vmem, size = 0x10000, scoped, tag = 'scratch operand']
  #allocation4 [shape = 'f32[1,128,128]{2,1,0:T(8,128)}', space=vmem, size = 0x10000, scoped, tag = 'scratch operand']
  %s0 = inlined_call_operand.hbm [shape: bf16[2,128,128], index: 0, kind: input, shape index: {}]
  %s1 = inlined_call_operand.hbm [shape: bf16[2,128,128], index: 1, kind: input, shape index: {}]
  %s2 = inlined_call_operand.hbm [shape: bf16[2,128,128], index: 2, kind: input, shape index: {}]
  %s3 = inlined_call_operand.hbm [shape: f32[1,128,128], index: 3, kind: input, shape index: {}]
  %s4 = inlined_call_operand.hbm [shape: f32[2,128,128], index: 4, kind: output, shape index: {}]
  %s5 = sld [smem:[#allocation0]]
  $region73: #{tpu_custom_call.1} parent=0
    _
  %s7 = ssub.s32 1, %s5
  %s8 = scalar_select 0, %s7, %s5
  $region1: #{tpu_custom_call.1} parent=0
    #allocation5 [shape = 'u8[65536]{0}', space=vmem, size = 0x10000, scoped, tag = 'input window, operand 0']
    #allocation6 [shape = 's32[2]{0}', space=sflag, size = 0x8, scoped, tag = 'scoped memory for tpu_custom_call.1']
    #allocation7 [shape = 's32[2]{0}', space=sflag, size = 0x8, scoped, tag = 'scoped memory for tpu_custom_call.1']
    #allocation8 [shape = 'u8[65536]{0}', space=vmem, size = 0x10000, scoped, tag = 'input window, operand 1']
    #allocation9 [shape = 's32[2]{0}', space=sflag, size = 0x8, scoped, tag = 'scoped memory for tpu_custom_call.1']
    #allocation10 [shape = 'u8[65536]{0}', space=vmem, size = 0x10000, scoped, tag = 'input window, operand 2']
    #allocation11 [shape = 'u8[65536]{0}', space=vmem, size = 0x10000, scoped, tag = 'input window, operand 3, single buffered']
    #allocation12 [shape = 's32[1]{0}', space=sflag, size = 0x4, scoped, tag = 'scoped memory for tpu_custom_call.1']
    #allocation13 [shape = 'u8[131072]{0}', space=vmem, size = 0x20000, scoped, tag = 'output window, operand 0']
    %9 = vsyncpa [#allocation6], 0
    %s10 = scalar_lea.sflag [#allocation6], 1
    %11 = vsyncpa %s10, 0
    %12 = vsyncpa [#allocation9], 0
    %s13 = scalar_lea.sflag [#allocation9], 1
    %14 = vsyncpa %s13, 0
    %15 = vsyncpa [#allocation12], 0
    %16 = vsyncpa [#allocation7], 0
    %s17 = scalar_lea.sflag [#allocation7], 1
    %18 = vsyncpa %s17, 0
    loop: start=0, step=1, limit=4
    $region2: #{tpu_custom_call.1} parent=1 // loop_pre_header
      _
    $region3: #{tpu_custom_call.1} parent=1 // loop_header
      %s20 = sphi 0, %s24
      %p21 = scmp.ge.s32.totalorder %s20, 4
      %s27 = sphi 0, %s46
      %s28 = sphi 0, %s42
      %s29 = sphi 0, %s38
      %s30 = sphi 0, %s27
      %s31 = sphi 0, %s28
      %s32 = sphi 0, %s29
      %s33 = sphi 0, %s30
      %s34 = sphi 0, %s31
      %s35 = sphi 0, %s32
      %s51 = sphi 0, %s53
      %s54 = sphi 0, %s51
      %s55 = sphi 0, %s54
      %s71 = sphi 0, %s55
      %s79 = sphi 0, %s81
      %s82 = sphi 0, %s79
      %s83 = sphi 0, %s82
      %s99 = sphi 0, %s83
      %s107 = sphi 0, %s109
      %s110 = sphi 0, %s107
      %s111 = sphi 0, %s110
      %s127 = sphi 0, %s111
      %s135 = sphi 0, %s137
      %s138 = sphi 0, %s135
      %s139 = sphi 0, %s138
      %s155 = sphi 0, %s139
      %s163 = sphi 0, %s165
      %s166 = sphi 0, %s163
      %s167 = sphi 0, %s166
      %s183 = sphi 0, %s167
    $region4: #{tpu_custom_call.1} parent=1 // loop_header_branch
      %23 = sbr.rel (%p21) target = $region8
    $region5: #{tpu_custom_call.1} parent=1 // loop_body
      %s25 = ssub.s32 %s20, 1
      %s26 = ssub.s32 %s20, 2
      %s36 = sadd.s32 1, %s29
      %p37 = scmp.ge.s32.totalorder %s36, 1
      %s38 = scalar_select %p37, 0, %s36
      %s39 = sadd.s32 1, %s28
      %s40 = scalar_select %p37, %s39, %s28
      %p41 = scmp.ge.s32.totalorder %s40, 1
      %s42 = scalar_select %p41, 0, %s40
      %s43 = sadd.s32 1, %s27
      %s44 = scalar_select %p41, %s43, %s27
      %p45 = scmp.ge.s32.totalorder %s44, 2
      %s46 = scalar_select %p45, 0, %s44
      %s47 = ssub.s32 %s27, %s46
      %s48 = ssub.s32 %s28, %s42
      %s49 = sor.u32 %s47, %s48
      %p50 = scmp.eq.s32.totalorder %s49, 0
      %s52 = sadd.s32 %s51, 1
      %s53 = scalar_select %p50, %s51, %s52
      %p56 = pneg %p50
      %p57 = scmp.eq.s32.totalorder %s20, 1
      %p58 = por %p56, %p57
      %p59 = scmp.ne.s32.totalorder %s51, %s54
      %p60 = scmp.eq.s32.totalorder %s20, 0
      %p61 = por %p59, %p60
      %p62 = scmp.ne.s32.totalorder %s51, %s54
      %p63 = scmp.eq.s32.totalorder %s25, 1
      %p64 = por %p62, %p63
      %p65 = scmp.ne.s32.totalorder %s54, %s55
      %p66 = scmp.eq.s32.totalorder %s25, 0
      %p67 = por %p65, %p66
      %p68 = scmp.ne.s32.totalorder %s54, %s55
      %p69 = scmp.eq.s32.totalorder %s26, 1
      %p70 = por %p68, %p69
      %p72 = scmp.ne.s32.totalorder %s55, %s71
      %p73 = scmp.eq.s32.totalorder %s26, 0
      %p74 = por %p72, %p73
      %s75 = ssub.s32 %s27, %s46
      %s76 = ssub.s32 %s29, %s38
      %s77 = sor.u32 %s75, %s76
      %p78 = scmp.eq.s32.totalorder %s77, 0
      %s80 = sadd.s32 %s79, 1
      %s81 = scalar_select %p78, %s79, %s80
      %p84 = pneg %p78
      %p85 = scmp.eq.s32.totalorder %s20, 1
      %p86 = por %p84, %p85
      %p87 = scmp.ne.s32.totalorder %s79, %s82
      %p88 = scmp.eq.s32.totalorder %s20, 0
      %p89 = por %p87, %p88
      %p90 = scmp.ne.s32.totalorder %s79, %s82
      %p91 = scmp.eq.s32.totalorder %s25, 1
      %p92 = por %p90, %p91
      %p93 = scmp.ne.s32.totalorder %s82, %s83
      %p94 = scmp.eq.s32.totalorder %s25, 0
      %p95 = por %p93, %p94
      %p96 = scmp.ne.s32.totalorder %s82, %s83
      %p97 = scmp.eq.s32.totalorder %s26, 1
      %p98 = por %p96, %p97
      %p100 = scmp.ne.s32.totalorder %s83, %s99
      %p101 = scmp.eq.s32.totalorder %s26, 0
      %p102 = por %p100, %p101
      %s103 = ssub.s32 %s27, %s46
      %s104 = ssub.s32 %s29, %s38
      %s105 = sor.u32 %s103, %s104
      %p106 = scmp.eq.s32.totalorder %s105, 0
      %s108 = sadd.s32 %s107, 1
      %s109 = scalar_select %p106, %s107, %s108
      %p112 = pneg %p106
      %p113 = scmp.eq.s32.totalorder %s20, 1
      %p114 = por %p112, %p113
      %p115 = scmp.ne.s32.totalorder %s107, %s110
      %p116 = scmp.eq.s32.totalorder %s20, 0
      %p117 = por %p115, %p116
      %p118 = scmp.ne.s32.totalorder %s107, %s110
      %p119 = scmp.eq.s32.totalorder %s25, 1
      %p120 = por %p118, %p119
      %p121 = scmp.ne.s32.totalorder %s110, %s111
      %p122 = scmp.eq.s32.totalorder %s25, 0
      %p123 = por %p121, %p122
      %p124 = scmp.ne.s32.totalorder %s110, %s111
      %p125 = scmp.eq.s32.totalorder %s26, 1
      %p126 = por %p124, %p125
      %p128 = scmp.ne.s32.totalorder %s111, %s127
      %p129 = scmp.eq.s32.totalorder %s26, 0
      %p130 = por %p128, %p129
      %s131 = ssub.s32 %s28, %s42
      %s132 = ssub.s32 %s29, %s38
      %s133 = sor.u32 %s131, %s132
      %p134 = scmp.eq.s32.totalorder %s133, 0
      %s136 = sadd.s32 %s135, 1
      %s137 = scalar_select %p134, %s135, %s136
      %p140 = pneg %p134
      %p141 = scmp.eq.s32.totalorder %s20, 1
      %p142 = por %p140, %p141
      %p143 = scmp.ne.s32.totalorder %s135, %s138
      %p144 = scmp.eq.s32.totalorder %s20, 0
      %p145 = por %p143, %p144
      %p146 = scmp.ne.s32.totalorder %s135, %s138
      %p147 = scmp.eq.s32.totalorder %s25, 1
      %p148 = por %p146, %p147
      %p149 = scmp.ne.s32.totalorder %s138, %s139
      %p150 = scmp.eq.s32.totalorder %s25, 0
      %p151 = por %p149, %p150
      %p152 = scmp.ne.s32.totalorder %s138, %s139
      %p153 = scmp.eq.s32.totalorder %s26, 1
      %p154 = por %p152, %p153
      %p156 = scmp.ne.s32.totalorder %s139, %s155
      %p157 = scmp.eq.s32.totalorder %s26, 0
      %p158 = por %p156, %p157
      %s159 = ssub.s32 %s27, %s46
      %s160 = ssub.s32 %s28, %s42
      %s161 = sor.u32 %s159, %s160
      %p162 = scmp.eq.s32.totalorder %s161, 0
      %s164 = sadd.s32 %s163, 1
      %s165 = scalar_select %p162, %s163, %s164
      %p168 = pneg %p162
      %p169 = scmp.eq.s32.totalorder %s20, 1
      %p170 = por %p168, %p169
      %p171 = scmp.ne.s32.totalorder %s163, %s166
      %p172 = scmp.eq.s32.totalorder %s20, 0
      %p173 = por %p171, %p172
      %p174 = scmp.ne.s32.totalorder %s163, %s166
      %p175 = scmp.eq.s32.totalorder %s25, 1
      %p176 = por %p174, %p175
      %p177 = scmp.ne.s32.totalorder %s166, %s167
      %p178 = scmp.eq.s32.totalorder %s25, 0
      %p179 = por %p177, %p178
      %p180 = scmp.ne.s32.totalorder %s166, %s167
      %p181 = scmp.eq.s32.totalorder %s26, 1
      %p182 = por %p180, %p181
      %p184 = scmp.ne.s32.totalorder %s167, %s183
      %p185 = scmp.eq.s32.totalorder %s26, 0
      %p186 = por %p184, %p185
      %p187 = scmp.le.s32.totalorder 1, %s20
      %p188 = scmp.lt.s32.totalorder %s20, 3
      %p189 = pnand %p187, %p188
      %p190 = pneg %p189
      // Predicated region
      $region9: #{tpu_custom_call.1} parent=5 // pred_check
        _
      $region10: #{tpu_custom_call.1} parent=5 // pred_check_branch
        %192 = sbr.rel (%p189) target = $region12
      $region11: #{tpu_custom_call.1} parent=5 // pred_region
        %s193 = ssub.s32 %s20, 1
        // Predicated region
        $region13: #{tpu_custom_call.1} parent=11 // pred_check
          %p194 = pneg %p151
        $region14: #{tpu_custom_call.1} parent=11 // pred_check_branch
          %196 = sbr.rel (%p194) target = $region16
        $region15: #{tpu_custom_call.1} parent=11 // pred_region
          %s197 = smul.u32 16, %s31
          %s199 = ssub.s32 2048, 2048
          %200 = vsyncadd [#allocation12], %s199
          %s201 = sadd.s32 %s32, %s197
          %s202 = smul.addr %s201, 128
          %s203 = scalar_lea.hbm %s3, %s202
          %s204 = sshll.u32 [#allocation11], 4
          %s205 = int_to_ptr.vmem [resolvable:$true] %s204
          %210 = dma.hbm_to_vmem [thread:$0]  %s203, 2048, %s205, [#allocation12], 128, 128, 8
        $region16: #{tpu_custom_call.1} parent=11 // pred_fallthru
          _
      $region12: #{tpu_custom_call.1} parent=5 // pred_fallthru
        _
      %p211 = scmp.lt.s32.totalorder %s20, 2
      // Predicated region
      $region17: #{tpu_custom_call.1} parent=5 // pred_check
        %p212 = pneg %p211
      $region18: #{tpu_custom_call.1} parent=5 // pred_check_branch
        %214 = sbr.rel (%p212) target = $region20
      $region19: #{tpu_custom_call.1} parent=5 // pred_region
        // Predicated region
        $region21: #{tpu_custom_call.1} parent=19 // pred_check
          %p215 = pneg %p61
        $region22: #{tpu_custom_call.1} parent=19 // pred_check_branch
          %217 = sbr.rel (%p215) target = $region24
        $region23: #{tpu_custom_call.1} parent=19 // pred_region
          %s218 = sand.u32 %s51, 1
          %s219 = scalar_lea.sflag [#allocation6], %s218
          %s220 = sand.u32 %s51, 1
          %s221 = smul.addr %s220, 64
          %s222 = scalar_lea.vmem [#allocation5], %s221
          %s223 = smul.u32 16, %s28
          %s225 = ssub.s32 1024, 1024
          %226 = vsyncadd %s219, %s225
          %s227 = smul.addr %s27, 16
          %s228 = sadd.s32 %s223, %s227
          %s229 = smul.addr %s228, 64
          %s230 = scalar_lea.hbm %s0, %s229
          %s231 = sshll.u32 %s222, 4
          %s232 = int_to_ptr.vmem [resolvable:$true] %s231
          %237 = dma.hbm_to_vmem [thread:$0]  %s230, 1024, %s232, %s219, 64, 64, 4
        $region24: #{tpu_custom_call.1} parent=19 // pred_fallthru
          _
        // Predicated region
        $region25: #{tpu_custom_call.1} parent=19 // pred_check
          %p238 = pneg %p89
        $region26: #{tpu_custom_call.1} parent=19 // pred_check_branch
          %240 = sbr.rel (%p238) target = $region28
        $region27: #{tpu_custom_call.1} parent=19 // pred_region
          %s241 = sand.u32 %s20, 1
          %s242 = scalar_lea.sflag [#allocation9], %s241
          %s243 = sand.u32 %s79, 1
          %s244 = smul.addr %s243, 64
          %s245 = scalar_lea.vmem [#allocation8], %s244
          %s246 = smul.u32 16, %s29
          %s248 = ssub.s32 1024, 1024
          %249 = vsyncadd %s242, %s248
          %s250 = smul.addr %s27, 16
          %s251 = sadd.s32 %s246, %s250
          %s252 = smul.addr %s251, 64
          %s253 = scalar_lea.hbm %s1, %s252
          %s254 = sshll.u32 %s245, 4
          %s255 = int_to_ptr.vmem [resolvable:$true] %s254
          %260 = dma.hbm_to_vmem [thread:$0]  %s253, 1024, %s255, %s242, 64, 64, 4
        $region28: #{tpu_custom_call.1} parent=19 // pred_fallthru
          _
        // Predicated region
        $region29: #{tpu_custom_call.1} parent=19 // pred_check
          %p261 = pneg %p117
        $region30: #{tpu_custom_call.1} parent=19 // pred_check_branch
          %263 = sbr.rel (%p261) target = $region32
        $region31: #{tpu_custom_call.1} parent=19 // pred_region
          %s264 = sand.u32 %s20, 1
          %s265 = scalar_lea.sflag [#allocation9], %s264
          %s266 = sand.u32 %s107, 1
          %s267 = smul.addr %s266, 64
          %s268 = scalar_lea.vmem [#allocation10], %s267
          %s269 = smul.u32 16, %s29
          %s271 = ssub.s32 1024, 1024
          %272 = vsyncadd %s265, %s271
          %s273 = smul.addr %s27, 16
          %s274 = sadd.s32 %s269, %s273
          %s275 = smul.addr %s274, 64
          %s276 = scalar_lea.hbm %s2, %s275
          %s277 = sshll.u32 %s268, 4
          %s278 = int_to_ptr.vmem [resolvable:$true] %s277
          %283 = dma.hbm_to_vmem [thread:$0]  %s276, 1024, %s278, %s265, 64, 64, 4
        $region32: #{tpu_custom_call.1} parent=19 // pred_fallthru
          _
      $region20: #{tpu_custom_call.1} parent=5 // pred_fallthru
        _
      %p284 = scmp.le.s32.totalorder 1, %s20
      %p285 = scmp.lt.s32.totalorder %s20, 3
      %p286 = pnand %p284, %p285
      %p287 = pneg %p286
      // Predicated region
      $region33: #{tpu_custom_call.1} parent=5 // pred_check
        _
      $region34: #{tpu_custom_call.1} parent=5 // pred_check_branch
        %289 = sbr.rel (%p286) target = $region36
      $region35: #{tpu_custom_call.1} parent=5 // pred_region
        %s290 = ssub.s32 %s20, 1
        %s291 = sand.u32 %s54, 1
        %s292 = scalar_lea.sflag [#allocation6], %s291
        %s293 = sand.u32 %s54, 1
        %s294 = smul.addr %s293, 64
        %s295 = scalar_lea.vmem [#allocation5], %s294
        // Predicated region
        $region37: #{tpu_custom_call.1} parent=35 // pred_check
          %p296 = pneg %p67
        $region38: #{tpu_custom_call.1} parent=35 // pred_check_branch
          %298 = sbr.rel (%p296) target = $region40
        $region39: #{tpu_custom_call.1} parent=35 // pred_region
          %299 = dma.done %s292, 1024
        $region40: #{tpu_custom_call.1} parent=35 // pred_fallthru
          _
        %s300 = sand.u32 %s25, 1
        %s301 = scalar_lea.sflag [#allocation9], %s300
        %s302 = sand.u32 %s82, 1
        %s303 = smul.addr %s302, 64
        %s304 = scalar_lea.vmem [#allocation8], %s303
        // Predicated region
        $region41: #{tpu_custom_call.1} parent=35 // pred_check
          %p305 = pneg %p95
        $region42: #{tpu_custom_call.1} parent=35 // pred_check_branch
          %307 = sbr.rel (%p305) target = $region44
        $region43: #{tpu_custom_call.1} parent=35 // pred_region
          %308 = dma.done %s301, 1024
        $region44: #{tpu_custom_call.1} parent=35 // pred_fallthru
          _
        %s309 = sand.u32 %s25, 1
        %s310 = scalar_lea.sflag [#allocation9], %s309
        %s311 = sand.u32 %s110, 1
        %s312 = smul.addr %s311, 64
        %s313 = scalar_lea.vmem [#allocation10], %s312
        // Predicated region
        $region45: #{tpu_custom_call.1} parent=35 // pred_check
          %p314 = pneg %p123
        $region46: #{tpu_custom_call.1} parent=35 // pred_check_branch
          %316 = sbr.rel (%p314) target = $region48
        $region47: #{tpu_custom_call.1} parent=35 // pred_region
          %317 = dma.done %s310, 1024
        $region48: #{tpu_custom_call.1} parent=35 // pred_fallthru
          _
        // Predicated region
        $region49: #{tpu_custom_call.1} parent=35 // pred_check
          %p318 = pneg %p151
        $region50: #{tpu_custom_call.1} parent=35 // pred_check_branch
          %320 = sbr.rel (%p318) target = $region52
        $region51: #{tpu_custom_call.1} parent=35 // pred_region
          %321 = dma.done [#allocation12], 2048
        $region52: #{tpu_custom_call.1} parent=35 // pred_fallthru
          _
        %s322 = sand.u32 %s54, 1
        %s323 = scalar_lea.sflag [#allocation6], %s322
        %s324 = sand.u32 %s54, 1
        %s325 = smul.addr %s324, 64
        %s326 = scalar_lea.vmem [#allocation5], %s325
        %p327 = pneg %p67
        %p328 = pneg %p64
        %s329 = sand.u32 %s25, 1
        %s330 = scalar_lea.sflag [#allocation9], %s329
        %s331 = sand.u32 %s82, 1
        %s332 = smul.addr %s331, 64
        %s333 = scalar_lea.vmem [#allocation8], %s332
        %p334 = pneg %p95
        %p335 = pneg %p92
        %s336 = sand.u32 %s25, 1
        %s337 = scalar_lea.sflag [#allocation9], %s336
        %s338 = sand.u32 %s110, 1
        %s339 = smul.addr %s338, 64
        %s340 = scalar_lea.vmem [#allocation10], %s339
        %p341 = pneg %p123
        %p342 = pneg %p120
        %p343 = pneg %p151
        %p344 = pneg %p148
        %p345 = pneg %p179
        %p346 = pneg %p176
        %s347 = sand.u32 %s166, 1
        %s348 = scalar_lea.sflag [#allocation7], %s347
        %s349 = sand.u32 %s166, 1
        %s350 = smul.addr %s349, 128
        %s351 = scalar_lea.vmem [#allocation13], %s350
        %s352 = smul.u32 16, %s31
        %s353 = smul.u32 16, %s32
        %s354 = smul.u32 16, %s32
        %s355 = smul.u32 16, %s31
        %s356 = smul.u32 16, %s31
        %p358 = scmp.eq.s32.totalorder %s32, 0
        // Predicated region
        $region53: #{tpu_custom_call.1} parent=35 // pred_check
          %p359 = pneg %p358
        $region54: #{tpu_custom_call.1} parent=35 // pred_check_branch
          %361 = sbr.rel (%p359) target = $region56
        $region55: #{tpu_custom_call.1} parent=35 // pred_region
          %vm362 = vcmask 7168
          %363 = vst.msk [vmem:[#allocation2] sm:$0xff] %vm362, -inf
          %364 = vst.msk [vmem:[#allocation2 + $0x8] sm:$0xff] %vm362, -inf
          %365 = vst.msk [vmem:[#allocation2 + $0x10] sm:$0xff] %vm362, -inf
          %366 = vst.msk [vmem:[#allocation2 + $0x18] sm:$0xff] %vm362, -inf
          %367 = vst.msk [vmem:[#allocation2 + $0x20] sm:$0xff] %vm362, -inf
          %368 = vst.msk [vmem:[#allocation2 + $0x28] sm:$0xff] %vm362, -inf
          %369 = vst.msk [vmem:[#allocation2 + $0x30] sm:$0xff] %vm362, -inf
          %370 = vst.msk [vmem:[#allocation2 + $0x38] sm:$0xff] %vm362, -inf
          %371 = vst.msk [vmem:[#allocation2 + $0x40] sm:$0xff] %vm362, -inf
          %372 = vst.msk [vmem:[#allocation2 + $0x48] sm:$0xff] %vm362, -inf
          %373 = vst.msk [vmem:[#allocation2 + $0x50] sm:$0xff] %vm362, -inf
          %374 = vst.msk [vmem:[#allocation2 + $0x58] sm:$0xff] %vm362, -inf
          %375 = vst.msk [vmem:[#allocation2 + $0x60] sm:$0xff] %vm362, -inf
          %376 = vst.msk [vmem:[#allocation2 + $0x68] sm:$0xff] %vm362, -inf
          %377 = vst.msk [vmem:[#allocation2 + $0x70] sm:$0xff] %vm362, -inf
          %378 = vst.msk [vmem:[#allocation2 + $0x78] sm:$0xff] %vm362, -inf
          %379 = vst.msk [vmem:[#allocation3] sm:$0xff] %vm362, 0.0
          %380 = vst.msk [vmem:[#allocation3 + $0x8] sm:$0xff] %vm362, 0.0
          %381 = vst.msk [vmem:[#allocation3 + $0x10] sm:$0xff] %vm362, 0.0
          %382 = vst.msk [vmem:[#allocation3 + $0x18] sm:$0xff] %vm362, 0.0
          %383 = vst.msk [vmem:[#allocation3 + $0x20] sm:$0xff] %vm362, 0.0
          %384 = vst.msk [vmem:[#allocation3 + $0x28] sm:$0xff] %vm362, 0.0
          %385 = vst.msk [vmem:[#allocation3 + $0x30] sm:$0xff] %vm362, 0.0
          %386 = vst.msk [vmem:[#allocation3 + $0x38] sm:$0xff] %vm362, 0.0
          %387 = vst.msk [vmem:[#allocation3 + $0x40] sm:$0xff] %vm362, 0.0
          %388 = vst.msk [vmem:[#allocation3 + $0x48] sm:$0xff] %vm362, 0.0
          %389 = vst.msk [vmem:[#allocation3 + $0x50] sm:$0xff] %vm362, 0.0
          %390 = vst.msk [vmem:[#allocation3 + $0x58] sm:$0xff] %vm362, 0.0
          %391 = vst.msk [vmem:[#allocation3 + $0x60] sm:$0xff] %vm362, 0.0
          %392 = vst.msk [vmem:[#allocation3 + $0x68] sm:$0xff] %vm362, 0.0
          %393 = vst.msk [vmem:[#allocation3 + $0x70] sm:$0xff] %vm362, 0.0
          %394 = vst.msk [vmem:[#allocation3 + $0x78] sm:$0xff] %vm362, 0.0
          %395 = vst [vmem:[#allocation4] sm:$0xff] 0.0
          %396 = vst [vmem:[#allocation4 + $0x8] sm:$0xff] 0.0
          %397 = vst [vmem:[#allocation4 + $0x10] sm:$0xff] 0.0
          %398 = vst [vmem:[#allocation4 + $0x18] sm:$0xff] 0.0
          %399 = vst [vmem:[#allocation4 + $0x20] sm:$0xff] 0.0
          %400 = vst [vmem:[#allocation4 + $0x28] sm:$0xff] 0.0
          %401 = vst [vmem:[#allocation4 + $0x30] sm:$0xff] 0.0
          %402 = vst [vmem:[#allocation4 + $0x38] sm:$0xff] 0.0
          %403 = vst [vmem:[#allocation4 + $0x40] sm:$0xff] 0.0
          %404 = vst [vmem:[#allocation4 + $0x48] sm:$0xff] 0.0
          %405 = vst [vmem:[#allocation4 + $0x50] sm:$0xff] 0.0
          %406 = vst [vmem:[#allocation4 + $0x58] sm:$0xff] 0.0
          %407 = vst [vmem:[#allocation4 + $0x60] sm:$0xff] 0.0
          %408 = vst [vmem:[#allocation4 + $0x68] sm:$0xff] 0.0
          %409 = vst [vmem:[#allocation4 + $0x70] sm:$0xff] 0.0
          %410 = vst [vmem:[#allocation4 + $0x78] sm:$0xff] 0.0
        $region56: #{tpu_custom_call.1} parent=35 // pred_fallthru
          _
        %v411 = vld [vmem:[%s295] sm:$0xf]
        %v412 = vld [vmem:[%s295 + $0x4] sm:$0xf]
        %v413 = vld [vmem:[%s295 + $0x8] sm:$0xf]
        %v414 = vld [vmem:[%s295 + $0xc] sm:$0xf]
        %v415 = vld [vmem:[%s295 + $0x10] sm:$0xf]
        %v416 = vld [vmem:[%s295 + $0x14] sm:$0xf]
        %v417 = vld [vmem:[%s295 + $0x18] sm:$0xf]
        %v418 = vld [vmem:[%s295 + $0x1c] sm:$0xf]
        %v419 = vld [vmem:[%s295 + $0x20] sm:$0xf]
        %v420 = vld [vmem:[%s295 + $0x24] sm:$0xf]
        %v421 = vld [vmem:[%s295 + $0x28] sm:$0xf]
        %v422 = vld [vmem:[%s295 + $0x2c] sm:$0xf]
        %v423 = vld [vmem:[%s295 + $0x30] sm:$0xf]
        %v424 = vld [vmem:[%s295 + $0x34] sm:$0xf]
        %v425 = vld [vmem:[%s295 + $0x38] sm:$0xf]
        %v426 = vld [vmem:[%s295 + $0x3c] sm:$0xf]
        %v427 = vld [vmem:[%s304] sm:$0xf]
        %v428 = vld [vmem:[%s304 + $0x4] sm:$0xf]
        %v429 = vld [vmem:[%s304 + $0x8] sm:$0xf]
        %v430 = vld [vmem:[%s304 + $0xc] sm:$0xf]
        %v431 = vld [vmem:[%s304 + $0x10] sm:$0xf]
        %v432 = vld [vmem:[%s304 + $0x14] sm:$0xf]
        %v433 = vld [vmem:[%s304 + $0x18] sm:$0xf]
        %v434 = vld [vmem:[%s304 + $0x1c] sm:$0xf]
        %v435 = vld [vmem:[%s304 + $0x20] sm:$0xf]
        %v436 = vld [vmem:[%s304 + $0x24] sm:$0xf]
        %v437 = vld [vmem:[%s304 + $0x28] sm:$0xf]
        %v438 = vld [vmem:[%s304 + $0x2c] sm:$0xf]
        %v439 = vld [vmem:[%s304 + $0x30] sm:$0xf]
        %v440 = vld [vmem:[%s304 + $0x34] sm:$0xf]
        %v441 = vld [vmem:[%s304 + $0x38] sm:$0xf]
        %v442 = vld [vmem:[%s304 + $0x3c] sm:$0xf]
        %v443 = vld [vmem:[#allocation11] sm:$0xff]
        %v444 = vld [vmem:[#allocation11 + $0x8] sm:$0xff]
        %v445 = vld [vmem:[#allocation11 + $0x10] sm:$0xff]
        %v446 = vld [vmem:[#allocation11 + $0x18] sm:$0xff]
        %v447 = vld [vmem:[#allocation11 + $0x20] sm:$0xff]
        %v448 = vld [vmem:[#allocation11 + $0x28] sm:$0xff]
        %v449 = vld [vmem:[#allocation11 + $0x30] sm:$0xff]
        %v450 = vld [vmem:[#allocation11 + $0x38] sm:$0xff]
        %v451 = vld [vmem:[#allocation11 + $0x40] sm:$0xff]
        %v452 = vld [vmem:[#allocation11 + $0x48] sm:$0xff]
        %v453 = vld [vmem:[#allocation11 + $0x50] sm:$0xff]
        %v454 = vld [vmem:[#allocation11 + $0x58] sm:$0xff]
        %v455 = vld [vmem:[#allocation11 + $0x60] sm:$0xff]
        %v456 = vld [vmem:[#allocation11 + $0x68] sm:$0xff]
        %v457 = vld [vmem:[#allocation11 + $0x70] sm:$0xff]
        %v458 = vld [vmem:[#allocation11 + $0x78] sm:$0xff]
        %v475 = vunpack.c.l.b16 %v411
        %v476 = vunpack.c.l.b16 %v412
        %v477 = vunpack.c.l.b16 %v413
        %v478 = vunpack.c.l.b16 %v414
        %v479 = vunpack.c.l.b16 %v415
        %v480 = vunpack.c.l.b16 %v416
        %v481 = vunpack.c.l.b16 %v417
        %v482 = vunpack.c.l.b16 %v418
        %v483 = vunpack.c.l.b16 %v419
        %v484 = vunpack.c.l.b16 %v420
        %v485 = vunpack.c.l.b16 %v421
        %v486 = vunpack.c.l.b16 %v422
        %v487 = vunpack.c.l.b16 %v423
        %v488 = vunpack.c.l.b16 %v424
        %v489 = vunpack.c.l.b16 %v425
        %v490 = vunpack.c.l.b16 %v426
        %v491 = vpack.c.b16 %v476, %v475
        %v492 = vpack.c.b16 %v478, %v477
        %v493 = vpack.c.b16 %v480, %v479
        %v494 = vpack.c.b16 %v482, %v481
        %v495 = vpack.c.b16 %v484, %v483
        %v496 = vpack.c.b16 %v486, %v485
        %v497 = vpack.c.b16 %v488, %v487
        %v498 = vpack.c.b16 %v490, %v489
        %v523 = vunpack.c.l.b16 %v427
        %v524 = vunpack.c.l.b16 %v428
        %v525 = vunpack.c.l.b16 %v429
        %v526 = vunpack.c.l.b16 %v430
        %v527 = vunpack.c.l.b16 %v431
        %v528 = vunpack.c.l.b16 %v432
        %v529 = vunpack.c.l.b16 %v433
        %v530 = vunpack.c.l.b16 %v434
        %v531 = vunpack.c.l.b16 %v435
        %v532 = vunpack.c.l.b16 %v436
        %v533 = vunpack.c.l.b16 %v437
        %v534 = vunpack.c.l.b16 %v438
        %v535 = vunpack.c.l.b16 %v439
        %v536 = vunpack.c.l.b16 %v440
        %v537 = vunpack.c.l.b16 %v441
        %v538 = vunpack.c.l.b16 %v442
        %v539 = vpack.c.b16 %v524, %v523
        %v540 = vpack.c.b16 %v526, %v525
        %v541 = vpack.c.b16 %v528, %v527
        %v542 = vpack.c.b16 %v530, %v529
        %v543 = vpack.c.b16 %v532, %v531
        %v544 = vpack.c.b16 %v534, %v533
        %v545 = vpack.c.b16 %v536, %v535
        %v546 = vpack.c.b16 %v538, %v537
        %555 = vmatprep.subr.bf16.mxu0 0
        %556 = vmatpush1.bf16.xpose.msra.mxu0 %v539
        %557 = vmatprep.subr.bf16.mxu0 0
        %558 = vmatpush1.bf16.xpose.msra.mxu0 %v540
        %559 = vmatprep.subr.bf16.mxu0 0
        %560 = vmatpush1.bf16.xpose.msra.mxu0 %v541
        %561 = vmatprep.subr.bf16.mxu0 0
        %562 = vmatpush1.bf16.xpose.msra.mxu0 %v542
        %563 = vmatprep.subr.bf16.mxu0 0
        %564 = vmatpush1.bf16.xpose.msra.mxu0 %v543
        %565 = vmatprep.subr.bf16.mxu0 0
        %566 = vmatpush1.bf16.xpose.msra.mxu0 %v544
        %567 = vmatprep.subr.bf16.mxu0 0
        %568 = vmatpush1.bf16.xpose.msra.mxu0 %v545
        %569 = vmatprep.subr.bf16.mxu0 0
        %570 = vmatpush1.bf16.xpose.msra.mxu0 %v546
        %571 = vmatprep.subr.bf16.mxu0 0
        %572 = vmatpush1.bf16.xpose.msra.mxu0 0
        %573 = vmatprep.subr.bf16.mxu0 0
        %574 = vmatpush1.bf16.xpose.msra.mxu0 0
        %575 = vmatprep.subr.bf16.mxu0 0
        %576 = vmatpush1.bf16.xpose.msra.mxu0 0
        %577 = vmatprep.subr.bf16.mxu0 0
        %578 = vmatpush1.bf16.xpose.msra.mxu0 0
        %579 = vmatprep.subr.bf16.mxu0 0
        %580 = vmatpush1.bf16.xpose.msra.mxu0 0
        %581 = vmatprep.subr.bf16.mxu0 0
        %582 = vmatpush1.bf16.xpose.msra.mxu0 0
        %583 = vmatprep.subr.bf16.mxu0 0
        %584 = vmatpush1.bf16.xpose.msra.mxu0 0
        %585 = vmatprep.subr.bf16.mxu0 0
        %586 = vmatpush1.bf16.xpose.msra.mxu0 0
        %587 = vmatprep.mubr.bf16.mxu0 0
        %588 = vmatmul.mubr.bf16.gmra.mrb[0].mxu0 %v491
        %v589 = vpop.f32.mrb[0].mxu0
        %v590 = vadd.f32 %v443, %v589
        %v591 = vpop.f32.mrb[0].mxu0
        %v592 = vpop.f32.mrb[0].mxu0
        %v593 = vadd.f32 %v444, %v592
        %v594 = vpop.f32.mrb[0].mxu0
        %595 = vmatprep.mubr.bf16.mxu0 0
        %596 = vmatmul.mubr.bf16.gmra.mrb[0].mxu0 %v492
        %v597 = vpop.f32.mrb[0].mxu0
        %v598 = vadd.f32 %v445, %v597
        %v599 = vpop.f32.mrb[0].mxu0
        %v600 = vpop.f32.mrb[0].mxu0
        %v601 = vadd.f32 %v446, %v600
        %v602 = vpop.f32.mrb[0].mxu0
        %603 = vmatprep.mubr.bf16.mxu0 0
        %604 = vmatmul.mubr.bf16.gmra.mrb[0].mxu0 %v493
        %v605 = vpop.f32.mrb[0].mxu0
        %v606 = vadd.f32 %v447, %v605
        %v607 = vpop.f32.mrb[0].mxu0
        %v608 = vpop.f32.mrb[0].mxu0
        %v609 = vadd.f32 %v448, %v608
        %v610 = vpop.f32.mrb[0].mxu0
        %611 = vmatprep.mubr.bf16.mxu0 0
        %612 = vmatmul.mubr.bf16.gmra.mrb[0].mxu0 %v494
        %v613 = vpop.f32.mrb[0].mxu0
        %v614 = vadd.f32 %v449, %v613
        %v615 = vpop.f32.mrb[0].mxu0
        %v616 = vpop.f32.mrb[0].mxu0
        %v617 = vadd.f32 %v450, %v616
        %v618 = vpop.f32.mrb[0].mxu0
        %619 = vmatprep.mubr.bf16.mxu0 0
        %620 = vmatmul.mubr.bf16.gmra.mrb[0].mxu0 %v495
        %v621 = vpop.f32.mrb[0].mxu0
        %v622 = vadd.f32 %v451, %v621
        %v623 = vpop.f32.mrb[0].mxu0
        %v624 = vpop.f32.mrb[0].mxu0
        %v625 = vadd.f32 %v452, %v624
        %v626 = vpop.f32.mrb[0].mxu0
        %627 = vmatprep.mubr.bf16.mxu0 0
        %628 = vmatmul.mubr.bf16.gmra.mrb[0].mxu0 %v496
        %v629 = vpop.f32.mrb[0].mxu0
        %v630 = vadd.f32 %v453, %v629
        %v631 = vpop.f32.mrb[0].mxu0
        %v632 = vpop.f32.mrb[0].mxu0
        %v633 = vadd.f32 %v454, %v632
        %v634 = vpop.f32.mrb[0].mxu0
        %635 = vmatprep.mubr.bf16.mxu0 0
        %636 = vmatmul.mubr.bf16.gmra.mrb[0].mxu0 %v497
        %v637 = vpop.f32.mrb[0].mxu0
        %v638 = vadd.f32 %v455, %v637
        %v639 = vpop.f32.mrb[0].mxu0
        %v640 = vpop.f32.mrb[0].mxu0
        %v641 = vadd.f32 %v456, %v640
        %v642 = vpop.f32.mrb[0].mxu0
        %643 = vmatprep.mubr.bf16.mxu0 0
        %644 = vmatmul.mubr.bf16.gmra.mrb[0].mxu0 %v498
        %v645 = vpop.f32.mrb[0].mxu0
        %v646 = vadd.f32 %v457, %v645
        %v647 = vpop.f32.mrb[0].mxu0
        %v648 = vpop.f32.mrb[0].mxu0
        %v649 = vadd.f32 %v458, %v648
        %v650 = vpop.f32.mrb[0].mxu0
        %651 = vdwg.mxu0
        %v652 = vld [vmem:[#allocation2] sm:$0xff]
        %v653 = vld [vmem:[#allocation2 + $0x8] sm:$0xff]
        %v654 = vld [vmem:[#allocation2 + $0x10] sm:$0xff]
        %v655 = vld [vmem:[#allocation2 + $0x18] sm:$0xff]
        %v656 = vld [vmem:[#allocation2 + $0x20] sm:$0xff]
        %v657 = vld [vmem:[#allocation2 + $0x28] sm:$0xff]
        %v658 = vld [vmem:[#allocation2 + $0x30] sm:$0xff]
        %v659 = vld [vmem:[#allocation2 + $0x38] sm:$0xff]
        %v660 = vld [vmem:[#allocation2 + $0x40] sm:$0xff]
        %v661 = vld [vmem:[#allocation2 + $0x48] sm:$0xff]
        %v662 = vld [vmem:[#allocation2 + $0x50] sm:$0xff]
        %v663 = vld [vmem:[#allocation2 + $0x58] sm:$0xff]
        %v664 = vld [vmem:[#allocation2 + $0x60] sm:$0xff]
        %v665 = vld [vmem:[#allocation2 + $0x68] sm:$0xff]
        %v666 = vld [vmem:[#allocation2 + $0x70] sm:$0xff]
        %v667 = vld [vmem:[#allocation2 + $0x78] sm:$0xff]
        %668 = vmax.xlane.f32.xlu0 %v590
        %v669 = vpop.xlane.xlu0 %668
        %670 = vmax.xlane.f32.xlu0 %v593
        %v671 = vpop.xlane.xlu0 %670
        %672 = vmax.xlane.f32.xlu0 %v598
        %v673 = vpop.xlane.xlu0 %672
        %674 = vmax.xlane.f32.xlu0 %v601
        %v675 = vpop.xlane.xlu0 %674
        %676 = vmax.xlane.f32.xlu0 %v606
        %v677 = vpop.xlane.xlu0 %676
        %678 = vmax.xlane.f32.xlu0 %v609
        %v679 = vpop.xlane.xlu0 %678
        %680 = vmax.xlane.f32.xlu0 %v614
        %v681 = vpop.xlane.xlu0 %680
        %682 = vmax.xlane.f32.xlu0 %v617
        %v683 = vpop.xlane.xlu0 %682
        %684 = vmax.xlane.f32.xlu0 %v622
        %v685 = vpop.xlane.xlu0 %684
        %686 = vmax.xlane.f32.xlu0 %v625
        %v687 = vpop.xlane.xlu0 %686
        %688 = vmax.xlane.f32.xlu0 %v630
        %v689 = vpop.xlane.xlu0 %688
        %690 = vmax.xlane.f32.xlu0 %v633
        %v691 = vpop.xlane.xlu0 %690
        %692 = vmax.xlane.f32.xlu0 %v638
        %v693 = vpop.xlane.xlu0 %692
        %694 = vmax.xlane.f32.xlu0 %v641
        %v695 = vpop.xlane.xlu0 %694
        %696 = vmax.xlane.f32.xlu0 %v646
        %v697 = vpop.xlane.xlu0 %696
        %698 = vmax.xlane.f32.xlu0 %v649
        %v699 = vpop.xlane.xlu0 %698
        %v700 = vmax.f32 %v652, %v669
        %v701 = vmax.f32 %v653, %v671
        %v702 = vmax.f32 %v654, %v673
        %v703 = vmax.f32 %v655, %v675
        %v704 = vmax.f32 %v656, %v677
        %v705 = vmax.f32 %v657, %v679
        %v706 = vmax.f32 %v658, %v681
        %v707 = vmax.f32 %v659, %v683
        %v708 = vmax.f32 %v660, %v685
        %v709 = vmax.f32 %v661, %v687
        %v710 = vmax.f32 %v662, %v689
        %v711 = vmax.f32 %v663, %v691
        %v712 = vmax.f32 %v664, %v693
        %v713 = vmax.f32 %v665, %v695
        %v714 = vmax.f32 %v666, %v697
        %v715 = vmax.f32 %v667, %v699
        %v716 = vsub.f32 %v652, %v700
        %v717 = vsub.f32 %v653, %v701
        %v718 = vsub.f32 %v654, %v702
        %v719 = vsub.f32 %v655, %v703
        %v720 = vsub.f32 %v656, %v704
        %v721 = vsub.f32 %v657, %v705
        %v722 = vsub.f32 %v658, %v706
        %v723 = vsub.f32 %v659, %v707
        %v724 = vsub.f32 %v660, %v708
        %v725 = vsub.f32 %v661, %v709
        %v726 = vsub.f32 %v662, %v710
        %v727 = vsub.f32 %v663, %v711
        %v728 = vsub.f32 %v664, %v712
        %v729 = vsub.f32 %v665, %v713
        %v730 = vsub.f32 %v666, %v714
        %v731 = vsub.f32 %v667, %v715
        %v732 = vmul.f32 %v716, 1.442695
        %v733 = vpow.pop %v732
        %v734 = vmul.f32 %v717, 1.442695
        %v735 = vpow.pop %v734
        %v736 = vmul.f32 %v718, 1.442695
        %v737 = vpow.pop %v736
        %v738 = vmul.f32 %v719, 1.442695
        %v739 = vpow.pop %v738
        %v740 = vmul.f32 %v720, 1.442695
        %v741 = vpow.pop %v740
        %v742 = vmul.f32 %v721, 1.442695
        %v743 = vpow.pop %v742
        %v744 = vmul.f32 %v722, 1.442695
        %v745 = vpow.pop %v744
        %v746 = vmul.f32 %v723, 1.442695
        %v747 = vpow.pop %v746
        %v748 = vmul.f32 %v724, 1.442695
        %v749 = vpow.pop %v748
        %v750 = vmul.f32 %v725, 1.442695
        %v751 = vpow.pop %v750
        %v752 = vmul.f32 %v726, 1.442695
        %v753 = vpow.pop %v752
        %v754 = vmul.f32 %v727, 1.442695
        %v755 = vpow.pop %v754
        %v756 = vmul.f32 %v728, 1.442695
        %v757 = vpow.pop %v756
        %v758 = vmul.f32 %v729, 1.442695
        %v759 = vpow.pop %v758
        %v760 = vmul.f32 %v730, 1.442695
        %v761 = vpow.pop %v760
        %v762 = vmul.f32 %v731, 1.442695
        %v763 = vpow.pop %v762
        %765 = vset.pattern.permute.xlu0 0
        %766 = vperm.xlu0 %765, %v700
        %v767 = vpop.permute.xlu0 %766
        %770 = vset.pattern.permute.xlu0 0
        %771 = vperm.xlu0 %770, %v701
        %v772 = vpop.permute.xlu0 %771
        %775 = vset.pattern.permute.xlu0 0
        %776 = vperm.xlu0 %775, %v702
        %v777 = vpop.permute.xlu0 %776
        %780 = vset.pattern.permute.xlu0 0
        %781 = vperm.xlu0 %780, %v703
        %v782 = vpop.permute.xlu0 %781
        %785 = vset.pattern.permute.xlu0 0
        %786 = vperm.xlu0 %785, %v704
        %v787 = vpop.permute.xlu0 %786
        %790 = vset.pattern.permute.xlu0 0
        %791 = vperm.xlu0 %790, %v705
        %v792 = vpop.permute.xlu0 %791
        %795 = vset.pattern.permute.xlu0 0
        %796 = vperm.xlu0 %795, %v706
        %v797 = vpop.permute.xlu0 %796
        %800 = vset.pattern.permute.xlu0 0
        %801 = vperm.xlu0 %800, %v707
        %v802 = vpop.permute.xlu0 %801
        %805 = vset.pattern.permute.xlu0 0
        %806 = vperm.xlu0 %805, %v708
        %v807 = vpop.permute.xlu0 %806
        %810 = vset.pattern.permute.xlu0 0
        %811 = vperm.xlu0 %810, %v709
        %v812 = vpop.permute.xlu0 %811
        %815 = vset.pattern.permute.xlu0 0
        %816 = vperm.xlu0 %815, %v710
        %v817 = vpop.permute.xlu0 %816
        %820 = vset.pattern.permute.xlu0 0
        %821 = vperm.xlu0 %820, %v711
        %v822 = vpop.permute.xlu0 %821
        %825 = vset.pattern.permute.xlu0 0
        %826 = vperm.xlu0 %825, %v712
        %v827 = vpop.permute.xlu0 %826
        %830 = vset.pattern.permute.xlu0 0
        %831 = vperm.xlu0 %830, %v713
        %v832 = vpop.permute.xlu0 %831
        %835 = vset.pattern.permute.xlu0 0
        %836 = vperm.xlu0 %835, %v714
        %v837 = vpop.permute.xlu0 %836
        %840 = vset.pattern.permute.xlu0 0
        %841 = vperm.xlu0 %840, %v715
        %v842 = vpop.permute.xlu0 %841
        %v844 = vsub.f32 %v590, %v767
        %v845 = vsub.f32 %v593, %v772
        %v846 = vsub.f32 %v598, %v777
        %v847 = vsub.f32 %v601, %v782
        %v848 = vsub.f32 %v606, %v787
        %v849 = vsub.f32 %v609, %v792
        %v850 = vsub.f32 %v614, %v797
        %v851 = vsub.f32 %v617, %v802
        %v852 = vsub.f32 %v622, %v807
        %v853 = vsub.f32 %v625, %v812
        %v854 = vsub.f32 %v630, %v817
        %v855 = vsub.f32 %v633, %v822
        %v856 = vsub.f32 %v638, %v827
        %v857 = vsub.f32 %v641, %v832
        %v858 = vsub.f32 %v646, %v837
        %v859 = vsub.f32 %v649, %v842
        %v860 = vmul.f32 %v844, 1.442695
        %v861 = vpow.pop %v860
        %v862 = vmul.f32 %v845, 1.442695
        %v863 = vpow.pop %v862
        %v864 = vmul.f32 %v846, 1.442695
        %v865 = vpow.pop %v864
        %v866 = vmul.f32 %v847, 1.442695
        %v867 = vpow.pop %v866
        %v868 = vmul.f32 %v848, 1.442695
        %v869 = vpow.pop %v868
        %v870 = vmul.f32 %v849, 1.442695
        %v871 = vpow.pop %v870
        %v872 = vmul.f32 %v850, 1.442695
        %v873 = vpow.pop %v872
        %v874 = vmul.f32 %v851, 1.442695
        %v875 = vpow.pop %v874
        %v876 = vmul.f32 %v852, 1.442695
        %v877 = vpow.pop %v876
        %v878 = vmul.f32 %v853, 1.442695
        %v879 = vpow.pop %v878
        %v880 = vmul.f32 %v854, 1.442695
        %v881 = vpow.pop %v880
        %v882 = vmul.f32 %v855, 1.442695
        %v883 = vpow.pop %v882
        %v884 = vmul.f32 %v856, 1.442695
        %v885 = vpow.pop %v884
        %v886 = vmul.f32 %v857, 1.442695
        %v887 = vpow.pop %v886
        %v888 = vmul.f32 %v858, 1.442695
        %v889 = vpow.pop %v888
        %v890 = vmul.f32 %v859, 1.442695
        %v891 = vpow.pop %v890
        %v892 = vld [vmem:[#allocation3] sm:$0xff]
        %v893 = vld [vmem:[#allocation3 + $0x8] sm:$0xff]
        %v894 = vld [vmem:[#allocation3 + $0x10] sm:$0xff]
        %v895 = vld [vmem:[#allocation3 + $0x18] sm:$0xff]
        %v896 = vld [vmem:[#allocation3 + $0x20] sm:$0xff]
        %v897 = vld [vmem:[#allocation3 + $0x28] sm:$0xff]
        %v898 = vld [vmem:[#allocation3 + $0x30] sm:$0xff]
        %v899 = vld [vmem:[#allocation3 + $0x38] sm:$0xff]
        %v900 = vld [vmem:[#allocation3 + $0x40] sm:$0xff]
        %v901 = vld [vmem:[#allocation3 + $0x48] sm:$0xff]
        %v902 = vld [vmem:[#allocation3 + $0x50] sm:$0xff]
        %v903 = vld [vmem:[#allocation3 + $0x58] sm:$0xff]
        %v904 = vld [vmem:[#allocation3 + $0x60] sm:$0xff]
        %v905 = vld [vmem:[#allocation3 + $0x68] sm:$0xff]
        %v906 = vld [vmem:[#allocation3 + $0x70] sm:$0xff]
        %v907 = vld [vmem:[#allocation3 + $0x78] sm:$0xff]
        %v908 = vmul.f32 %v733, %v892
        %v909 = vmul.f32 %v735, %v893
        %v910 = vmul.f32 %v737, %v894
        %v911 = vmul.f32 %v739, %v895
        %v912 = vmul.f32 %v741, %v896
        %v913 = vmul.f32 %v743, %v897
        %v914 = vmul.f32 %v745, %v898
        %v915 = vmul.f32 %v747, %v899
        %v916 = vmul.f32 %v749, %v900
        %v917 = vmul.f32 %v751, %v901
        %v918 = vmul.f32 %v753, %v902
        %v919 = vmul.f32 %v755, %v903
        %v920 = vmul.f32 %v757, %v904
        %v921 = vmul.f32 %v759, %v905
        %v922 = vmul.f32 %v761, %v906
        %v923 = vmul.f32 %v763, %v907
        %924 = vadd.xlane.f32.xlu0 %v861
        %v925 = vpop.xlane.xlu0 %924
        %926 = vadd.xlane.f32.xlu0 %v863
        %v927 = vpop.xlane.xlu0 %926
        %928 = vadd.xlane.f32.xlu0 %v865
        %v929 = vpop.xlane.xlu0 %928
        %930 = vadd.xlane.f32.xlu0 %v867
        %v931 = vpop.xlane.xlu0 %930
        %932 = vadd.xlane.f32.xlu0 %v869
        %v933 = vpop.xlane.xlu0 %932
        %934 = vadd.xlane.f32.xlu0 %v871
        %v935 = vpop.xlane.xlu0 %934
        %936 = vadd.xlane.f32.xlu0 %v873
        %v937 = vpop.xlane.xlu0 %936
        %938 = vadd.xlane.f32.xlu0 %v875
        %v939 = vpop.xlane.xlu0 %938
        %940 = vadd.xlane.f32.xlu0 %v877
        %v941 = vpop.xlane.xlu0 %940
        %942 = vadd.xlane.f32.xlu0 %v879
        %v943 = vpop.xlane.xlu0 %942
        %944 = vadd.xlane.f32.xlu0 %v881
        %v945 = vpop.xlane.xlu0 %944
        %946 = vadd.xlane.f32.xlu0 %v883
        %v947 = vpop.xlane.xlu0 %946
        %948 = vadd.xlane.f32.xlu0 %v885
        %v949 = vpop.xlane.xlu0 %948
        %950 = vadd.xlane.f32.xlu0 %v887
        %v951 = vpop.xlane.xlu0 %950
        %952 = vadd.xlane.f32.xlu0 %v889
        %v953 = vpop.xlane.xlu0 %952
        %954 = vadd.xlane.f32.xlu0 %v891
        %v955 = vpop.xlane.xlu0 %954
        %v956 = vadd.f32 %v908, %v925
        %v957 = vadd.f32 %v909, %v927
        %v958 = vadd.f32 %v910, %v929
        %v959 = vadd.f32 %v911, %v931
        %v960 = vadd.f32 %v912, %v933
        %v961 = vadd.f32 %v913, %v935
        %v962 = vadd.f32 %v914, %v937
        %v963 = vadd.f32 %v915, %v939
        %v964 = vadd.f32 %v916, %v941
        %v965 = vadd.f32 %v917, %v943
        %v966 = vadd.f32 %v918, %v945
        %v967 = vadd.f32 %v919, %v947
        %v968 = vadd.f32 %v920, %v949
        %v969 = vadd.f32 %v921, %v951
        %v970 = vadd.f32 %v922, %v953
        %v971 = vadd.f32 %v923, %v955
        %vm972 = vcmask 7168
        %973 = vst.msk [vmem:[#allocation3] sm:$0xff] %vm972, %v956
        %974 = vst.msk [vmem:[#allocation3 + $0x8] sm:$0xff] %vm972, %v957
        %975 = vst.msk [vmem:[#allocation3 + $0x10] sm:$0xff] %vm972, %v958
        %976 = vst.msk [vmem:[#allocation3 + $0x18] sm:$0xff] %vm972, %v959
        %977 = vst.msk [vmem:[#allocation3 + $0x20] sm:$0xff] %vm972, %v960
        %978 = vst.msk [vmem:[#allocation3 + $0x28] sm:$0xff] %vm972, %v961
        %979 = vst.msk [vmem:[#allocation3 + $0x30] sm:$0xff] %vm972, %v962
        %980 = vst.msk [vmem:[#allocation3 + $0x38] sm:$0xff] %vm972, %v963
        %981 = vst.msk [vmem:[#allocation3 + $0x40] sm:$0xff] %vm972, %v964
        %982 = vst.msk [vmem:[#allocation3 + $0x48] sm:$0xff] %vm972, %v965
        %983 = vst.msk [vmem:[#allocation3 + $0x50] sm:$0xff] %vm972, %v966
        %984 = vst.msk [vmem:[#allocation3 + $0x58] sm:$0xff] %vm972, %v967
        %985 = vst.msk [vmem:[#allocation3 + $0x60] sm:$0xff] %vm972, %v968
        %986 = vst.msk [vmem:[#allocation3 + $0x68] sm:$0xff] %vm972, %v969
        %987 = vst.msk [vmem:[#allocation3 + $0x70] sm:$0xff] %vm972, %v970
        %988 = vst.msk [vmem:[#allocation3 + $0x78] sm:$0xff] %vm972, %v971
        %v989 = vld [vmem:[#allocation4] sm:$0xff]
        %v990 = vld [vmem:[#allocation4 + $0x8] sm:$0xff]
        %v991 = vld [vmem:[#allocation4 + $0x10] sm:$0xff]
        %v992 = vld [vmem:[#allocation4 + $0x18] sm:$0xff]
        %v993 = vld [vmem:[#allocation4 + $0x20] sm:$0xff]
        %v994 = vld [vmem:[#allocation4 + $0x28] sm:$0xff]
        %v995 = vld [vmem:[#allocation4 + $0x30] sm:$0xff]
        %v996 = vld [vmem:[#allocation4 + $0x38] sm:$0xff]
        %v997 = vld [vmem:[#allocation4 + $0x40] sm:$0xff]
        %v998 = vld [vmem:[#allocation4 + $0x48] sm:$0xff]
        %v999 = vld [vmem:[#allocation4 + $0x50] sm:$0xff]
        %v1000 = vld [vmem:[#allocation4 + $0x58] sm:$0xff]
        %v1001 = vld [vmem:[#allocation4 + $0x60] sm:$0xff]
        %v1002 = vld [vmem:[#allocation4 + $0x68] sm:$0xff]
        %v1003 = vld [vmem:[#allocation4 + $0x70] sm:$0xff]
        %v1004 = vld [vmem:[#allocation4 + $0x78] sm:$0xff]
        %1006 = vset.pattern.permute.xlu0 0
        %1007 = vperm.xlu0 %1006, %v733
        %v1008 = vpop.permute.xlu0 %1007
        %1011 = vset.pattern.permute.xlu0 0
        %1012 = vperm.xlu0 %1011, %v735
        %v1013 = vpop.permute.xlu0 %1012
        %1016 = vset.pattern.permute.xlu0 0
        %1017 = vperm.xlu0 %1016, %v737
        %v1018 = vpop.permute.xlu0 %1017
        %1021 = vset.pattern.permute.xlu0 0
        %1022 = vperm.xlu0 %1021, %v739
        %v1023 = vpop.permute.xlu0 %1022
        %1026 = vset.pattern.permute.xlu0 0
        %1027 = vperm.xlu0 %1026, %v741
        %v1028 = vpop.permute.xlu0 %1027
        %1031 = vset.pattern.permute.xlu0 0
        %1032 = vperm.xlu0 %1031, %v743
        %v1033 = vpop.permute.xlu0 %1032
        %1036 = vset.pattern.permute.xlu0 0
        %1037 = vperm.xlu0 %1036, %v745
        %v1038 = vpop.permute.xlu0 %1037
        %1041 = vset.pattern.permute.xlu0 0
        %1042 = vperm.xlu0 %1041, %v747
        %v1043 = vpop.permute.xlu0 %1042
        %1046 = vset.pattern.permute.xlu0 0
        %1047 = vperm.xlu0 %1046, %v749
        %v1048 = vpop.permute.xlu0 %1047
        %1051 = vset.pattern.permute.xlu0 0
        %1052 = vperm.xlu0 %1051, %v751
        %v1053 = vpop.permute.xlu0 %1052
        %1056 = vset.pattern.permute.xlu0 0
        %1057 = vperm.xlu0 %1056, %v753
        %v1058 = vpop.permute.xlu0 %1057
        %1061 = vset.pattern.permute.xlu0 0
        %1062 = vperm.xlu0 %1061, %v755
        %v1063 = vpop.permute.xlu0 %1062
        %1066 = vset.pattern.permute.xlu0 0
        %1067 = vperm.xlu0 %1066, %v757
        %v1068 = vpop.permute.xlu0 %1067
        %1071 = vset.pattern.permute.xlu0 0
        %1072 = vperm.xlu0 %1071, %v759
        %v1073 = vpop.permute.xlu0 %1072
        %1076 = vset.pattern.permute.xlu0 0
        %1077 = vperm.xlu0 %1076, %v761
        %v1078 = vpop.permute.xlu0 %1077
        %1081 = vset.pattern.permute.xlu0 0
        %1082 = vperm.xlu0 %1081, %v763
        %v1083 = vpop.permute.xlu0 %1082
        %v1085 = vmul.f32 %v1008, %v989
        %v1086 = vmul.f32 %v1013, %v990
        %v1087 = vmul.f32 %v1018, %v991
        %v1088 = vmul.f32 %v1023, %v992
        %v1089 = vmul.f32 %v1028, %v993
        %v1090 = vmul.f32 %v1033, %v994
        %v1091 = vmul.f32 %v1038, %v995
        %v1092 = vmul.f32 %v1043, %v996
        %v1093 = vmul.f32 %v1048, %v997
        %v1094 = vmul.f32 %v1053, %v998
        %v1095 = vmul.f32 %v1058, %v999
        %v1096 = vmul.f32 %v1063, %v1000
        %v1097 = vmul.f32 %v1068, %v1001
        %v1098 = vmul.f32 %v1073, %v1002
        %v1099 = vmul.f32 %v1078, %v1003
        %v1100 = vmul.f32 %v1083, %v1004
        %v1101 = vpack.c.bf16 %v863, %v861
        %v1102 = vpack.c.bf16 %v867, %v865
        %v1103 = vpack.c.bf16 %v871, %v869
        %v1104 = vpack.c.bf16 %v875, %v873
        %v1105 = vpack.c.bf16 %v879, %v877
        %v1106 = vpack.c.bf16 %v883, %v881
        %v1107 = vpack.c.bf16 %v887, %v885
        %v1108 = vpack.c.bf16 %v891, %v889
        %v1109 = vld [vmem:[%s313] sm:$0xf]
        %v1110 = vld [vmem:[%s313 + $0x4] sm:$0xf]
        %v1111 = vld [vmem:[%s313 + $0x8] sm:$0xf]
        %v1112 = vld [vmem:[%s313 + $0xc] sm:$0xf]
        %v1113 = vld [vmem:[%s313 + $0x10] sm:$0xf]
        %v1114 = vld [vmem:[%s313 + $0x14] sm:$0xf]
        %v1115 = vld [vmem:[%s313 + $0x18] sm:$0xf]
        %v1116 = vld [vmem:[%s313 + $0x1c] sm:$0xf]
        %v1117 = vld [vmem:[%s313 + $0x20] sm:$0xf]
        %v1118 = vld [vmem:[%s313 + $0x24] sm:$0xf]
        %v1119 = vld [vmem:[%s313 + $0x28] sm:$0xf]
        %v1120 = vld [vmem:[%s313 + $0x2c] sm:$0xf]
        %v1121 = vld [vmem:[%s313 + $0x30] sm:$0xf]
        %v1122 = vld [vmem:[%s313 + $0x34] sm:$0xf]
        %v1123 = vld [vmem:[%s313 + $0x38] sm:$0xf]
        %v1124 = vld [vmem:[%s313 + $0x3c] sm:$0xf]
        %v1141 = vunpack.c.l.b16 %v1109
        %v1142 = vunpack.c.l.b16 %v1110
        %v1143 = vunpack.c.l.b16 %v1111
        %v1144 = vunpack.c.l.b16 %v1112
        %v1145 = vunpack.c.l.b16 %v1113
        %v1146 = vunpack.c.l.b16 %v1114
        %v1147 = vunpack.c.l.b16 %v1115
        %v1148 = vunpack.c.l.b16 %v1116
        %v1149 = vunpack.c.l.b16 %v1117
        %v1150 = vunpack.c.l.b16 %v1118
        %v1151 = vunpack.c.l.b16 %v1119
        %v1152 = vunpack.c.l.b16 %v1120
        %v1153 = vunpack.c.l.b16 %v1121
        %v1154 = vunpack.c.l.b16 %v1122
        %v1155 = vunpack.c.l.b16 %v1123
        %v1156 = vunpack.c.l.b16 %v1124
        %v1157 = vpack.c.b16 %v1142, %v1141
        %v1158 = vpack.c.b16 %v1144, %v1143
        %v1159 = vpack.c.b16 %v1146, %v1145
        %v1160 = vpack.c.b16 %v1148, %v1147
        %v1161 = vpack.c.b16 %v1150, %v1149
        %v1162 = vpack.c.b16 %v1152, %v1151
        %v1163 = vpack.c.b16 %v1154, %v1153
        %v1164 = vpack.c.b16 %v1156, %v1155
        %1173 = vmatprep.subr.bf16.mxu0 0
        %1174 = vmatpush1.bf16.msra.mxu0 %v1157
        %1175 = vmatprep.subr.bf16.mxu0 0
        %1176 = vmatpush1.bf16.msra.mxu0 %v1158
        %1177 = vmatprep.subr.bf16.mxu0 0
        %1178 = vmatpush1.bf16.msra.mxu0 %v1159
        %1179 = vmatprep.subr.bf16.mxu0 0
        %1180 = vmatpush1.bf16.msra.mxu0 %v1160
        %1181 = vmatprep.subr.bf16.mxu0 0
        %1182 = vmatpush1.bf16.msra.mxu0 %v1161
        %1183 = vmatprep.subr.bf16.mxu0 0
        %1184 = vmatpush1.bf16.msra.mxu0 %v1162
        %1185 = vmatprep.subr.bf16.mxu0 0
        %1186 = vmatpush1.bf16.msra.mxu0 %v1163
        %1187 = vmatprep.subr.bf16.mxu0 0
        %1188 = vmatpush1.bf16.msra.mxu0 %v1164
        %1189 = vmatprep.subr.bf16.mxu0 0
        %1190 = vmatpush1.bf16.msra.mxu0 0
        %1191 = vmatprep.subr.bf16.mxu0 0
        %1192 = vmatpush1.bf16.msra.mxu0 0
        %1193 = vmatprep.subr.bf16.mxu0 0
        %1194 = vmatpush1.bf16.msra.mxu0 0
        %1195 = vmatprep.subr.bf16.mxu0 0
        %1196 = vmatpush1.bf16.msra.mxu0 0
        %1197 = vmatprep.subr.bf16.mxu0 0
        %1198 = vmatpush1.bf16.msra.mxu0 0
        %1199 = vmatprep.subr.bf16.mxu0 0
        %1200 = vmatpush1.bf16.msra.mxu0 0
        %1201 = vmatprep.subr.bf16.mxu0 0
        %1202 = vmatpush1.bf16.msra.mxu0 0
        %1203 = vmatprep.subr.bf16.mxu0 0
        %1204 = vmatpush1.bf16.msra.mxu0 0
        %1205 = vmatprep.mubr.bf16.mxu0 0
        %1206 = vmatmul.mubr.bf16.gmra.mrb[0].mxu0 %v1101
        %v1207 = vpop.f32.mrb[0].mxu0
        %v1208 = vadd.f32 0.0, %v1207
        %v1209 = vpop.f32.mrb[0].mxu0
        %v1210 = vpop.f32.mrb[0].mxu0
        %v1211 = vadd.f32 0.0, %v1210
        %v1212 = vpop.f32.mrb[0].mxu0
        %1213 = vmatprep.mubr.bf16.mxu0 0
        %1214 = vmatmul.mubr.bf16.gmra.mrb[0].mxu0 %v1102
        %v1215 = vpop.f32.mrb[0].mxu0
        %v1216 = vadd.f32 0.0, %v1215
        %v1217 = vpop.f32.mrb[0].mxu0
        %v1218 = vpop.f32.mrb[0].mxu0
        %v1219 = vadd.f32 0.0, %v1218
        %v1220 = vpop.f32.mrb[0].mxu0
        %1221 = vmatprep.mubr.bf16.mxu0 0
        %1222 = vmatmul.mubr.bf16.gmra.mrb[0].mxu0 %v1103
        %v1223 = vpop.f32.mrb[0].mxu0
        %v1224 = vadd.f32 0.0, %v1223
        %v1225 = vpop.f32.mrb[0].mxu0
        %v1226 = vpop.f32.mrb[0].mxu0
        %v1227 = vadd.f32 0.0, %v1226
        %v1228 = vpop.f32.mrb[0].mxu0
        %1229 = vmatprep.mubr.bf16.mxu0 0
        %1230 = vmatmul.mubr.bf16.gmra.mrb[0].mxu0 %v1104
        %v1231 = vpop.f32.mrb[0].mxu0
        %v1232 = vadd.f32 0.0, %v1231
        %v1233 = vpop.f32.mrb[0].mxu0
        %v1234 = vpop.f32.mrb[0].mxu0
        %v1235 = vadd.f32 0.0, %v1234
        %v1236 = vpop.f32.mrb[0].mxu0
        %1237 = vmatprep.mubr.bf16.mxu0 0
        %1238 = vmatmul.mubr.bf16.gmra.mrb[0].mxu0 %v1105
        %v1239 = vpop.f32.mrb[0].mxu0
        %v1240 = vadd.f32 0.0, %v1239
        %v1241 = vpop.f32.mrb[0].mxu0
        %v1242 = vpop.f32.mrb[0].mxu0
        %v1243 = vadd.f32 0.0, %v1242
        %v1244 = vpop.f32.mrb[0].mxu0
        %1245 = vmatprep.mubr.bf16.mxu0 0
        %1246 = vmatmul.mubr.bf16.gmra.mrb[0].mxu0 %v1106
        %v1247 = vpop.f32.mrb[0].mxu0
        %v1248 = vadd.f32 0.0, %v1247
        %v1249 = vpop.f32.mrb[0].mxu0
        %v1250 = vpop.f32.mrb[0].mxu0
        %v1251 = vadd.f32 0.0, %v1250
        %v1252 = vpop.f32.mrb[0].mxu0
        %1253 = vmatprep.mubr.bf16.mxu0 0
        %1254 = vmatmul.mubr.bf16.gmra.mrb[0].mxu0 %v1107
        %v1255 = vpop.f32.mrb[0].mxu0
        %v1256 = vadd.f32 0.0, %v1255
        %v1257 = vpop.f32.mrb[0].mxu0
        %v1258 = vpop.f32.mrb[0].mxu0
        %v1259 = vadd.f32 0.0, %v1258
        %v1260 = vpop.f32.mrb[0].mxu0
        %1261 = vmatprep.mubr.bf16.mxu0 0
        %1262 = vmatmul.mubr.bf16.gmra.mrb[0].mxu0 %v1108
        %v1263 = vpop.f32.mrb[0].mxu0
        %v1264 = vadd.f32 0.0, %v1263
        %v1265 = vpop.f32.mrb[0].mxu0
        %v1266 = vpop.f32.mrb[0].mxu0
        %v1267 = vadd.f32 0.0, %v1266
        %v1268 = vpop.f32.mrb[0].mxu0
        %1269 = vdwg.mxu0
        %v1270 = vadd.f32 %v1085, %v1208
        %v1271 = vadd.f32 %v1086, %v1211
        %v1272 = vadd.f32 %v1087, %v1216
        %v1273 = vadd.f32 %v1088, %v1219
        %v1274 = vadd.f32 %v1089, %v1224
        %v1275 = vadd.f32 %v1090, %v1227
        %v1276 = vadd.f32 %v1091, %v1232
        %v1277 = vadd.f32 %v1092, %v1235
        %v1278 = vadd.f32 %v1093, %v1240
        %v1279 = vadd.f32 %v1094, %v1243
        %v1280 = vadd.f32 %v1095, %v1248
        %v1281 = vadd.f32 %v1096, %v1251
        %v1282 = vadd.f32 %v1097, %v1256
        %v1283 = vadd.f32 %v1098, %v1259
        %v1284 = vadd.f32 %v1099, %v1264
        %v1285 = vadd.f32 %v1100, %v1267
        %1286 = vst [vmem:[#allocation4] sm:$0xff] %v1270
        %1287 = vst [vmem:[#allocation4 + $0x8] sm:$0xff] %v1271
        %1288 = vst [vmem:[#allocation4 + $0x10] sm:$0xff] %v1272
        %1289 = vst [vmem:[#allocation4 + $0x18] sm:$0xff] %v1273
        %1290 = vst [vmem:[#allocation4 + $0x20] sm:$0xff] %v1274
        %1291 = vst [vmem:[#allocation4 + $0x28] sm:$0xff] %v1275
        %1292 = vst [vmem:[#allocation4 + $0x30] sm:$0xff] %v1276
        %1293 = vst [vmem:[#allocation4 + $0x38] sm:$0xff] %v1277
        %1294 = vst [vmem:[#allocation4 + $0x40] sm:$0xff] %v1278
        %1295 = vst [vmem:[#allocation4 + $0x48] sm:$0xff] %v1279
        %1296 = vst [vmem:[#allocation4 + $0x50] sm:$0xff] %v1280
        %1297 = vst [vmem:[#allocation4 + $0x58] sm:$0xff] %v1281
        %1298 = vst [vmem:[#allocation4 + $0x60] sm:$0xff] %v1282
        %1299 = vst [vmem:[#allocation4 + $0x68] sm:$0xff] %v1283
        %1300 = vst [vmem:[#allocation4 + $0x70] sm:$0xff] %v1284
        %1301 = vst [vmem:[#allocation4 + $0x78] sm:$0xff] %v1285
        %1302 = vst.msk [vmem:[#allocation2] sm:$0xff] %vm972, %v700
        %1303 = vst.msk [vmem:[#allocation2 + $0x8] sm:$0xff] %vm972, %v701
        %1304 = vst.msk [vmem:[#allocation2 + $0x10] sm:$0xff] %vm972, %v702
        %1305 = vst.msk [vmem:[#allocation2 + $0x18] sm:$0xff] %vm972, %v703
        %1306 = vst.msk [vmem:[#allocation2 + $0x20] sm:$0xff] %vm972, %v704
        %1307 = vst.msk [vmem:[#allocation2 + $0x28] sm:$0xff] %vm972, %v705
        %1308 = vst.msk [vmem:[#allocation2 + $0x30] sm:$0xff] %vm972, %v706
        %1309 = vst.msk [vmem:[#allocation2 + $0x38] sm:$0xff] %vm972, %v707
        %1310 = vst.msk [vmem:[#allocation2 + $0x40] sm:$0xff] %vm972, %v708
        %1311 = vst.msk [vmem:[#allocation2 + $0x48] sm:$0xff] %vm972, %v709
        %1312 = vst.msk [vmem:[#allocation2 + $0x50] sm:$0xff] %vm972, %v710
        %1313 = vst.msk [vmem:[#allocation2 + $0x58] sm:$0xff] %vm972, %v711
        %1314 = vst.msk [vmem:[#allocation2 + $0x60] sm:$0xff] %vm972, %v712
        %1315 = vst.msk [vmem:[#allocation2 + $0x68] sm:$0xff] %vm972, %v713
        %1316 = vst.msk [vmem:[#allocation2 + $0x70] sm:$0xff] %vm972, %v714
        %1317 = vst.msk [vmem:[#allocation2 + $0x78] sm:$0xff] %vm972, %v715
        // Predicated region
        $region57: #{tpu_custom_call.1} parent=35 // pred_check
          %p1318 = pneg %p358
        $region58: #{tpu_custom_call.1} parent=35 // pred_check_branch
          %1320 = sbr.rel (%p1318) target = $region60
        $region59: #{tpu_custom_call.1} parent=35 // pred_region
          %v1321 = vld [vmem:[#allocation3] sm:$0xff]
          %v1322 = vld [vmem:[#allocation3 + $0x8] sm:$0xff]
          %v1323 = vld [vmem:[#allocation3 + $0x10] sm:$0xff]
          %v1324 = vld [vmem:[#allocation3 + $0x18] sm:$0xff]
          %v1325 = vld [vmem:[#allocation3 + $0x20] sm:$0xff]
          %v1326 = vld [vmem:[#allocation3 + $0x28] sm:$0xff]
          %v1327 = vld [vmem:[#allocation3 + $0x30] sm:$0xff]
          %v1328 = vld [vmem:[#allocation3 + $0x38] sm:$0xff]
          %v1329 = vld [vmem:[#allocation3 + $0x40] sm:$0xff]
          %v1330 = vld [vmem:[#allocation3 + $0x48] sm:$0xff]
          %v1331 = vld [vmem:[#allocation3 + $0x50] sm:$0xff]
          %v1332 = vld [vmem:[#allocation3 + $0x58] sm:$0xff]
          %v1333 = vld [vmem:[#allocation3 + $0x60] sm:$0xff]
          %v1334 = vld [vmem:[#allocation3 + $0x68] sm:$0xff]
          %v1335 = vld [vmem:[#allocation3 + $0x70] sm:$0xff]
          %v1336 = vld [vmem:[#allocation3 + $0x78] sm:$0xff]
          %v1337 = vrcp.pop %v1321
          %v1338 = vrcp.pop %v1322
          %v1339 = vrcp.pop %v1323
          %v1340 = vrcp.pop %v1324
          %v1341 = vrcp.pop %v1325
          %v1342 = vrcp.pop %v1326
          %v1343 = vrcp.pop %v1327
          %v1344 = vrcp.pop %v1328
          %v1345 = vrcp.pop %v1329
          %v1346 = vrcp.pop %v1330
          %v1347 = vrcp.pop %v1331
          %v1348 = vrcp.pop %v1332
          %v1349 = vrcp.pop %v1333
          %v1350 = vrcp.pop %v1334
          %v1351 = vrcp.pop %v1335
          %v1352 = vrcp.pop %v1336
          %v1353 = vld [vmem:[#allocation4] sm:$0xff]
          %v1354 = vld [vmem:[#allocation4 + $0x8] sm:$0xff]
          %v1355 = vld [vmem:[#allocation4 + $0x10] sm:$0xff]
          %v1356 = vld [vmem:[#allocation4 + $0x18] sm:$0xff]
          %v1357 = vld [vmem:[#allocation4 + $0x20] sm:$0xff]
          %v1358 = vld [vmem:[#allocation4 + $0x28] sm:$0xff]
          %v1359 = vld [vmem:[#allocation4 + $0x30] sm:$0xff]
          %v1360 = vld [vmem:[#allocation4 + $0x38] sm:$0xff]
          %v1361 = vld [vmem:[#allocation4 + $0x40] sm:$0xff]
          %v1362 = vld [vmem:[#allocation4 + $0x48] sm:$0xff]
          %v1363 = vld [vmem:[#allocation4 + $0x50] sm:$0xff]
          %v1364 = vld [vmem:[#allocation4 + $0x58] sm:$0xff]
          %v1365 = vld [vmem:[#allocation4 + $0x60] sm:$0xff]
          %v1366 = vld [vmem:[#allocation4 + $0x68] sm:$0xff]
          %v1367 = vld [vmem:[#allocation4 + $0x70] sm:$0xff]
          %v1368 = vld [vmem:[#allocation4 + $0x78] sm:$0xff]
          %1370 = vset.pattern.permute.xlu0 0
          %1371 = vperm.xlu0 %1370, %v1337
          %v1372 = vpop.permute.xlu0 %1371
          %1375 = vset.pattern.permute.xlu0 0
          %1376 = vperm.xlu0 %1375, %v1338
          %v1377 = vpop.permute.xlu0 %1376
          %1380 = vset.pattern.permute.xlu0 0
          %1381 = vperm.xlu0 %1380, %v1339
          %v1382 = vpop.permute.xlu0 %1381
          %1385 = vset.pattern.permute.xlu0 0
          %1386 = vperm.xlu0 %1385, %v1340
          %v1387 = vpop.permute.xlu0 %1386
          %1390 = vset.pattern.permute.xlu0 0
          %1391 = vperm.xlu0 %1390, %v1341
          %v1392 = vpop.permute.xlu0 %1391
          %1395 = vset.pattern.permute.xlu0 0
          %1396 = vperm.xlu0 %1395, %v1342
          %v1397 = vpop.permute.xlu0 %1396
          %1400 = vset.pattern.permute.xlu0 0
          %1401 = vperm.xlu0 %1400, %v1343
          %v1402 = vpop.permute.xlu0 %1401
          %1405 = vset.pattern.permute.xlu0 0
          %1406 = vperm.xlu0 %1405, %v1344
          %v1407 = vpop.permute.xlu0 %1406
          %1410 = vset.pattern.permute.xlu0 0
          %1411 = vperm.xlu0 %1410, %v1345
          %v1412 = vpop.permute.xlu0 %1411
          %1415 = vset.pattern.permute.xlu0 0
          %1416 = vperm.xlu0 %1415, %v1346
          %v1417 = vpop.permute.xlu0 %1416
          %1420 = vset.pattern.permute.xlu0 0
          %1421 = vperm.xlu0 %1420, %v1347
          %v1422 = vpop.permute.xlu0 %1421
          %1425 = vset.pattern.permute.xlu0 0
          %1426 = vperm.xlu0 %1425, %v1348
          %v1427 = vpop.permute.xlu0 %1426
          %1430 = vset.pattern.permute.xlu0 0
          %1431 = vperm.xlu0 %1430, %v1349
          %v1432 = vpop.permute.xlu0 %1431
          %1435 = vset.pattern.permute.xlu0 0
          %1436 = vperm.xlu0 %1435, %v1350
          %v1437 = vpop.permute.xlu0 %1436
          %1440 = vset.pattern.permute.xlu0 0
          %1441 = vperm.xlu0 %1440, %v1351
          %v1442 = vpop.permute.xlu0 %1441
          %1445 = vset.pattern.permute.xlu0 0
          %1446 = vperm.xlu0 %1445, %v1352
          %v1447 = vpop.permute.xlu0 %1446
          %v1449 = vmul.f32 %v1353, %v1372
          %v1450 = vmul.f32 %v1354, %v1377
          %v1451 = vmul.f32 %v1355, %v1382
          %v1452 = vmul.f32 %v1356, %v1387
          %v1453 = vmul.f32 %v1357, %v1392
          %v1454 = vmul.f32 %v1358, %v1397
          %v1455 = vmul.f32 %v1359, %v1402
          %v1456 = vmul.f32 %v1360, %v1407
          %v1457 = vmul.f32 %v1361, %v1412
          %v1458 = vmul.f32 %v1362, %v1417
          %v1459 = vmul.f32 %v1363, %v1422
          %v1460 = vmul.f32 %v1364, %v1427
          %v1461 = vmul.f32 %v1365, %v1432
          %v1462 = vmul.f32 %v1366, %v1437
          %v1463 = vmul.f32 %v1367, %v1442
          %v1464 = vmul.f32 %v1368, %v1447
          %1465 = vst [vmem:[%s351] sm:$0xff] %v1449
          %1466 = vst [vmem:[%s351 + $0x8] sm:$0xff] %v1450
          %1467 = vst [vmem:[%s351 + $0x10] sm:$0xff] %v1451
          %1468 = vst [vmem:[%s351 + $0x18] sm:$0xff] %v1452
          %1469 = vst [vmem:[%s351 + $0x20] sm:$0xff] %v1453
          %1470 = vst [vmem:[%s351 + $0x28] sm:$0xff] %v1454
          %1471 = vst [vmem:[%s351 + $0x30] sm:$0xff] %v1455
          %1472 = vst [vmem:[%s351 + $0x38] sm:$0xff] %v1456
          %1473 = vst [vmem:[%s351 + $0x40] sm:$0xff] %v1457
          %1474 = vst [vmem:[%s351 + $0x48] sm:$0xff] %v1458
          %1475 = vst [vmem:[%s351 + $0x50] sm:$0xff] %v1459
          %1476 = vst [vmem:[%s351 + $0x58] sm:$0xff] %v1460
          %1477 = vst [vmem:[%s351 + $0x60] sm:$0xff] %v1461
          %1478 = vst [vmem:[%s351 + $0x68] sm:$0xff] %v1462
          %1479 = vst [vmem:[%s351 + $0x70] sm:$0xff] %v1463
          %1480 = vst [vmem:[%s351 + $0x78] sm:$0xff] %v1464
        $region60: #{tpu_custom_call.1} parent=35 // pred_fallthru
          _
        %s1481 = sand.u32 %s166, 1
        %s1482 = scalar_lea.sflag [#allocation7], %s1481
        %s1483 = sand.u32 %s166, 1
        %s1484 = smul.addr %s1483, 128
        %s1485 = scalar_lea.vmem [#allocation13], %s1484
        // Predicated region
        $region61: #{tpu_custom_call.1} parent=35 // pred_check
          %p1486 = pneg %p176
        $region62: #{tpu_custom_call.1} parent=35 // pred_check_branch
          %1488 = sbr.rel (%p1486) target = $region64
        $region63: #{tpu_custom_call.1} parent=35 // pred_region
          %s1489 = smul.u32 16, %s31
          %s1491 = ssub.s32 2048, 2048
          %1492 = vsyncadd %s1482, %s1491
          %s1493 = smul.addr %s30, 16
          %s1494 = sadd.s32 %s1489, %s1493
          %s1495 = smul.addr %s1494, 128
          %s1496 = scalar_lea.hbm %s4, %s1495
          %s1497 = sshll.u32 %s1485, 4
          %s1498 = int_to_ptr.vmem [resolvable:$true] %s1497
          %1503 = dma.vmem_to_hbm [thread:$0]  %s1498, 2048, %s1496, %s1482, 128, 128, 8
        $region64: #{tpu_custom_call.1} parent=35 // pred_fallthru
          _
      $region36: #{tpu_custom_call.1} parent=5 // pred_fallthru
        _
      %p1504 = scmp.le.s32.totalorder 2, %s20
      // Predicated region
      $region65: #{tpu_custom_call.1} parent=5 // pred_check
        %p1505 = pneg %p1504
      $region66: #{tpu_custom_call.1} parent=5 // pred_check_branch
        %1507 = sbr.rel (%p1505) target = $region68
      $region67: #{tpu_custom_call.1} parent=5 // pred_region
        %s1508 = ssub.s32 %s20, 2
        // Predicated region
        $region69: #{tpu_custom_call.1} parent=67 // pred_check
          %p1509 = pneg %p182
        $region70: #{tpu_custom_call.1} parent=67 // pred_check_branch
          %1511 = sbr.rel (%p1509) target = $region72
        $region71: #{tpu_custom_call.1} parent=67 // pred_region
          %s1512 = sand.u32 %s167, 1
          %s1513 = scalar_lea.sflag [#allocation7], %s1512
          %s1514 = sand.u32 %s167, 1
          %s1515 = smul.addr %s1514, 128
          %s1516 = scalar_lea.vmem [#allocation13], %s1515
          %1517 = dma.done %s1513, 2048
        $region72: #{tpu_custom_call.1} parent=67 // pred_fallthru
          _
      $region68: #{tpu_custom_call.1} parent=5 // pred_fallthru
        _
    $region6: #{tpu_custom_call.1} parent=1 // loop_footer
      %s24 = sadd.s32 1, %s20
    $region7: #{tpu_custom_call.1} parent=1 // loop_footer_branch
      %19 = sbr.rel target = $region3
    $region8: #{tpu_custom_call.1} parent=1 // loop_exit
      _
    %1518 = vsyncpa [#allocation6], 1
    %s1519 = scalar_lea.sflag [#allocation6], 1
    %1520 = vsyncpa %s1519, 1
    %1521 = vsyncpa [#allocation9], 1
    %s1522 = scalar_lea.sflag [#allocation9], 1
    %1523 = vsyncpa %s1522, 1
    %1524 = vsyncpa [#allocation12], 1
    %1525 = vsyncpa [#allocation7], 1
    %s1526 = scalar_lea.sflag [#allocation7], 1
    %1527 = vsyncpa %s1526, 1

</llo_original>
